<compile_context>
chip_gen: v5e
topology: v5e:2x2
jax: 0.10.0
libtpu: 0.0.40
codegen_flags: <defaults>
</compile_context>

<pallas_src>
import jax
import jax.numpy as jnp
from jax.experimental import pallas as pl
from jax.experimental.pallas import tpu as pltpu


def _attention_kernel(enc_ref, dec_ref, we_ref, be_ref, wd_ref, bd_ref,
                      wf_ref, bf_ref, awe_ref, alpha_ref):
    # enc_ref  : (BT, P, E)  batch tile of encoded images
    # dec_ref  : (BT, D)     batch tile of decoder hidden states
    # we_ref   : (E, A)      encoder_att weight, pre-transposed in the wrapper
    # be_ref   : (1, A)
    # wd_ref   : (D, A)      decoder_att weight, pre-transposed in the wrapper
    # bd_ref   : (1, A)
    # wf_ref   : (1, A)      full_att weight (row vector)
    # bf_ref   : (1, 1)
    # awe_ref  : (BT, E)     attention-weighted encoding
    # alpha_ref: (BT, P)     attention weights (P on the lane axis)
    bt, p, e_dim = enc_ref.shape
    a_dim = we_ref.shape[1]

    enc = enc_ref[...]                                   # (BT, P, E)
    enc_flat = enc.reshape(bt * p, e_dim)                # (BT*P, E); P % 8 == 0

    # att1 = encoder_att(encoder_out): one MXU matmul for the whole tile.
    att1 = jnp.dot(enc_flat, we_ref[...],
                   preferred_element_type=jnp.float32) + be_ref[...]     # (BT*P, A)

    # att2 = decoder_att(decoder_hidden)
    att2 = jnp.dot(dec_ref[...], wd_ref[...],
                   preferred_element_type=jnp.float32) + bd_ref[...]     # (BT, A)

    # relu(att1 + att2.unsqueeze(1))
    h = jnp.maximum(att1.reshape(bt, p, a_dim) + att2[:, None, :], 0.0)  # (BT, P, A)

    # full_att(h).squeeze(2): VPU multiply + lane reduction over A
    # (no transpose of h, MXU stays free).
    att = jnp.sum(h * wf_ref[...], axis=-1) + bf_ref[...]                # (BT, P)

    # softmax over pixels — P sits on the lane axis -> per-row lane reductions
    # and a lane-dense alpha store.
    m = jnp.max(att, axis=-1, keepdims=True)
    ex = jnp.exp(att - m)
    alpha = ex / jnp.sum(ex, axis=-1, keepdims=True)                     # (BT, P)
    alpha_ref[...] = alpha.astype(alpha_ref.dtype)

    # (encoder_out * alpha.unsqueeze(2)).sum(dim=1) as one batched contraction
    # over the whole batch tile.
    awe = jnp.einsum("bqp,bpe->bqe",
                     alpha.reshape(bt, 1, p).astype(enc.dtype), enc,
                     preferred_element_type=jnp.float32)                 # (BT, 1, E)
    awe_ref[...] = awe.reshape(bt, e_dim).astype(awe_ref.dtype)


def attention_forward(encoder_out, decoder_hidden, params, b_tile=None):
    """Pallas forward pass. Returns (attention_weighted_encoding (B,E), alpha (B,P))."""
    B, P, E = encoder_out.shape
    D = decoder_hidden.shape[1]
    A = params["W_e"].shape[0]
    out_dtype = encoder_out.dtype

    # ---- batch-tile size heuristic -----------------------------------------
    if b_tile is None:
        b_tile = -(-256 // P)                       # aim for b_tile*P >= 256 (MXU M dim)
        b_tile = ((b_tile + 7) // 8) * 8            # sublane multiple
        # Cap so double-buffered encoder tiles stay well under the v7x 32 MiB
        # scoped-VMEM default (~8 MiB per buffer for the dominant input).
        tile_bytes = P * E * jnp.dtype(out_dtype).itemsize
        max_tile = max(8, (8 * 1024 * 1024) // max(1, tile_bytes))
        b_tile = max(8, min(b_tile, (max_tile // 8) * 8))

    # Pad the batch to a multiple of the tile (padded rows are sliced off).
    Bp = ((B + b_tile - 1) // b_tile) * b_tile
    if Bp != B:
        encoder_out = jnp.pad(encoder_out, ((0, Bp - B), (0, 0), (0, 0)))
        decoder_hidden = jnp.pad(decoder_hidden, ((0, Bp - B), (0, 0)))

    # Pre-transpose projection weights once (free layout plumbing outside the kernel).
    W_eT = params["W_e"].T                          # (E, A)
    W_dT = params["W_d"].T                          # (D, A)
    b_e = params["b_e"].reshape(1, A)
    b_d = params["b_d"].reshape(1, A)
    W_f = params["W_f"].reshape(1, A)
    b_f = params["b_f"].reshape(1, 1)

    grid_spec = pltpu.PrefetchScalarGridSpec(
        num_scalar_prefetch=0,
        grid=(Bp // b_tile,),
        in_specs=[
            pl.BlockSpec((b_tile, P, E), lambda b: (b, 0, 0)),   # encoder_out tile
            pl.BlockSpec((b_tile, D),    lambda b: (b, 0)),      # decoder_hidden tile
            pl.BlockSpec((E, A),         lambda b: (0, 0)),      # W_e^T (VMEM-resident)
            pl.BlockSpec((1, A),         lambda b: (0, 0)),      # b_e
            pl.BlockSpec((D, A),         lambda b: (0, 0)),      # W_d^T
            pl.BlockSpec((1, A),         lambda b: (0, 0)),      # b_d
            pl.BlockSpec((1, A),         lambda b: (0, 0)),      # W_f
            pl.BlockSpec((1, 1),         lambda b: (0, 0)),      # b_f
        ],
        out_specs=[
            pl.BlockSpec((b_tile, E), lambda b: (b, 0)),         # awe (lane-dense)
            pl.BlockSpec((b_tile, P), lambda b: (b, 0)),         # alpha (lane-dense)
        ],
    )

    awe, alpha = pl.pallas_call(
        _attention_kernel,
        out_shape=(
            jax.ShapeDtypeStruct((Bp, E), out_dtype),
            jax.ShapeDtypeStruct((Bp, P), out_dtype),
        ),
        grid_spec=grid_spec,
        compiler_params=pltpu.CompilerParams(
            dimension_semantics=("parallel",)),
    )(encoder_out, decoder_hidden, W_eT, b_e, W_dT, b_d, W_f, b_f)

    if Bp != B:
        awe = awe[:B]
        alpha = alpha[:B]
    return awe, alpha


def attention_reference(encoder_out, decoder_hidden, params):
    """Pure-JAX reference mirroring the PyTorch forward exactly."""
    att1 = encoder_out @ params["W_e"].T + params["b_e"]                    # (B, P, A)
    att2 = decoder_hidden @ params["W_d"].T + params["b_d"]                 # (B, A)
    h = jnp.maximum(att1 + att2[:, None, :], 0.0)                           # (B, P, A)
    att = (h @ params["W_f"].T + params["b_f"])[..., 0]                     # (B, P)
    alpha = jax.nn.softmax(att, axis=1)                                     # (B, P)
    awe = jnp.sum(encoder_out * alpha[:, :, None], axis=1)                  # (B, E)
    return awe, alpha


def init_params(key, encoder_dim, decoder_dim, attention_dim):
    k1, k2, k3, k4, k5, k6 = jax.random.split(key, 6)
    s = 0.1
    return {
        "W_e": s * jax.random.normal(k1, (attention_dim, encoder_dim), jnp.float32),
        "b_e": s * jax.random.normal(k2, (attention_dim,), jnp.float32),
        "W_d": s * jax.random.normal(k3, (attention_dim, decoder_dim), jnp.float32),
        "b_d": s * jax.random.normal(k4, (attention_dim,), jnp.float32),
        "W_f": s * jax.random.normal(k5, (1, attention_dim), jnp.float32),
        "b_f": s * jax.random.normal(k6, (1,), jnp.float32),
    }


if __name__ == "__main__":
    # 8x8 feature map -> 64 pixels; dims kept modest but tile/MXU friendly.
    B, P, E, D, A = 16, 64, 128, 128, 128

    key = jax.random.PRNGKey(0)
    k_enc, k_dec, k_par = jax.random.split(key, 3)
    encoder_out = jax.random.normal(k_enc, (B, P, E), jnp.float32)
    decoder_hidden = jax.random.normal(k_dec, (B, D), jnp.float32)
    params = init_params(k_par, E, D, A)

    awe, alpha = attention_forward(encoder_out, decoder_hidden, params)
    jax.block_until_ready((awe, alpha))

    awe_ref, alpha_ref = attention_reference(encoder_out, decoder_hidden, params)
    assert awe.shape == (B, E) and alpha.shape == (B, P)
    assert jnp.allclose(awe, awe_ref, atol=1e-5, rtol=1e-5)
    assert jnp.allclose(alpha, alpha_ref, atol=1e-5, rtol=1e-5)
    assert jnp.allclose(jnp.sum(alpha, axis=1), 1.0, atol=1e-5)

    # Exercise the batch-padding path (B not a multiple of the batch tile).
    awe2, alpha2 = attention_forward(encoder_out[:5], decoder_hidden[:5], params)
    jax.block_until_ready((awe2, alpha2))
    assert jnp.allclose(awe2, awe_ref[:5], atol=1e-5, rtol=1e-5)
    assert jnp.allclose(alpha2, alpha_ref[:5], atol=1e-5, rtol=1e-5)

    print("KERNEL_OK")
</pallas_src>

<mosaic_0001>
module attributes {stable_mosaic.version = 11 : i64} {
  func.func @_attention_kernel(%arg0: i32, %arg1: memref<8x64x128xf32, #tpu.memory_space<vmem>>, %arg2: memref<8x128xf32, #tpu.memory_space<vmem>>, %arg3: memref<128x128xf32, #tpu.memory_space<vmem>>, %arg4: memref<1x128xf32, #tpu.memory_space<vmem>>, %arg5: memref<128x128xf32, #tpu.memory_space<vmem>>, %arg6: memref<1x128xf32, #tpu.memory_space<vmem>>, %arg7: memref<1x128xf32, #tpu.memory_space<vmem>>, %arg8: memref<1x1xf32, #tpu.memory_space<vmem>>, %arg9: memref<8x128xf32, #tpu.memory_space<vmem>>, %arg10: memref<8x64xf32, #tpu.memory_space<vmem>>) attributes {dimension_semantics = [#tpu.dimension_semantics<parallel>], iteration_bounds = array<i64: 2>, scalar_prefetch = 0 : i64, scratch_operands = 0 : i64, tpu.core_type = #tpu.core_type<tc>, window_params = [{transform_indices = @transform_0, window_bounds = array<i64: 8, 64, 128>}, {transform_indices = @transform_1, window_bounds = array<i64: 8, 128>}, {pipeline_mode = #tpu.pipeline_mode<synchronous>, transform_indices = @transform_2, window_bounds = array<i64: 128, 128>}, {pipeline_mode = #tpu.pipeline_mode<synchronous>, transform_indices = @transform_3, window_bounds = array<i64: 1, 128>}, {pipeline_mode = #tpu.pipeline_mode<synchronous>, transform_indices = @transform_4, window_bounds = array<i64: 128, 128>}, {pipeline_mode = #tpu.pipeline_mode<synchronous>, transform_indices = @transform_5, window_bounds = array<i64: 1, 128>}, {pipeline_mode = #tpu.pipeline_mode<synchronous>, transform_indices = @transform_6, window_bounds = array<i64: 1, 128>}, {pipeline_mode = #tpu.pipeline_mode<synchronous>, transform_indices = @transform_7, window_bounds = array<i64: 1, 1>}, {transform_indices = @transform_8, window_bounds = array<i64: 8, 128>}, {transform_indices = @transform_9, window_bounds = array<i64: 8, 64>}]} {
    %c0 = arith.constant 0 : index
    %c0_0 = arith.constant 0 : index
    %c0_1 = arith.constant 0 : index
    %0 = vector.load %arg1[%c0, %c0_0, %c0_1] : memref<8x64x128xf32, #tpu.memory_space<vmem>>, vector<8x64x128xf32>
    %1 = vector.shape_cast %0 : vector<8x64x128xf32> to vector<512x128xf32>
    %c0_2 = arith.constant 0 : index
    %c0_3 = arith.constant 0 : index
    %2 = vector.load %arg3[%c0_2, %c0_3] : memref<128x128xf32, #tpu.memory_space<vmem>>, vector<128x128xf32>
    %cst = arith.constant dense<0.000000e+00> : vector<512x128xf32>
    %3 = tpu.matmul %1, %2, %cst {dimension_numbers = #tpu.dot_dimension_numbers<[1], [0], [0], [1], [0, 0, 1, 1], [], []>} : vector<512x128xf32>, vector<128x128xf32>, vector<512x128xf32> -> vector<512x128xf32>
    %c0_4 = arith.constant 0 : index
    %c0_5 = arith.constant 0 : index
    %4 = vector.load %arg4[%c0_4, %c0_5] : memref<1x128xf32, #tpu.memory_space<vmem>>, vector<1x128xf32>
    %5 = vector.broadcast %4 : vector<1x128xf32> to vector<512x128xf32>
    %6 = arith.addf %3, %5 : vector<512x128xf32>
    %c0_6 = arith.constant 0 : index
    %c0_7 = arith.constant 0 : index
    %7 = vector.load %arg2[%c0_6, %c0_7] : memref<8x128xf32, #tpu.memory_space<vmem>>, vector<8x128xf32>
    %c0_8 = arith.constant 0 : index
    %c0_9 = arith.constant 0 : index
    %8 = vector.load %arg5[%c0_8, %c0_9] : memref<128x128xf32, #tpu.memory_space<vmem>>, vector<128x128xf32>
    %cst_10 = arith.constant dense<0.000000e+00> : vector<8x128xf32>
    %9 = tpu.matmul %7, %8, %cst_10 {dimension_numbers = #tpu.dot_dimension_numbers<[1], [0], [0], [1], [0, 0, 1, 1], [], []>} : vector<8x128xf32>, vector<128x128xf32>, vector<8x128xf32> -> vector<8x128xf32>
    %c0_11 = arith.constant 0 : index
    %c0_12 = arith.constant 0 : index
    %10 = vector.load %arg6[%c0_11, %c0_12] : memref<1x128xf32, #tpu.memory_space<vmem>>, vector<1x128xf32>
    %11 = vector.broadcast %10 : vector<1x128xf32> to vector<8x128xf32>
    %12 = arith.addf %9, %11 : vector<8x128xf32>
    %13 = vector.shape_cast %6 : vector<512x128xf32> to vector<8x64x128xf32>
    %14 = vector.shape_cast %12 : vector<8x128xf32> to vector<8x1x128xf32>
    %15 = vector.broadcast %14 : vector<8x1x128xf32> to vector<8x64x128xf32>
    %16 = arith.addf %13, %15 : vector<8x64x128xf32>
    %cst_13 = arith.constant 0.000000e+00 : f32
    %17 = vector.broadcast %cst_13 : f32 to vector<8x64x128xf32>
    %18 = arith.maximumf %16, %17 : vector<8x64x128xf32>
    %c0_14 = arith.constant 0 : index
    %c0_15 = arith.constant 0 : index
    %19 = vector.load %arg7[%c0_14, %c0_15] : memref<1x128xf32, #tpu.memory_space<vmem>>, vector<1x128xf32>
    %20 = vector.shape_cast %19 : vector<1x128xf32> to vector<1x1x128xf32>
    %21 = vector.broadcast %20 : vector<1x1x128xf32> to vector<8x64x128xf32>
    %22 = arith.mulf %18, %21 : vector<8x64x128xf32>
    %cst_16 = arith.constant dense<0.000000e+00> : vector<8x64xf32>
    %23 = vector.multi_reduction <add>, %22, %cst_16 [2] : vector<8x64x128xf32> to vector<8x64xf32>
    %c0_17 = arith.constant 0 : index
    %c0_18 = arith.constant 0 : index
    %24 = vector.load %arg8[%c0_17, %c0_18] : memref<1x1xf32, #tpu.memory_space<vmem>>, vector<1x1xf32>
    %25 = vector.broadcast %24 : vector<1x1xf32> to vector<8x64xf32>
    %26 = arith.addf %23, %25 : vector<8x64xf32>
    %cst_19 = arith.constant dense<0xFF800000> : vector<8xf32>
    %27 = vector.multi_reduction <maximumf>, %26, %cst_19 [1] : vector<8x64xf32> to vector<8xf32>
    %28 = vector.shape_cast %27 : vector<8xf32> to vector<8x1xf32>
    %29 = vector.broadcast %28 : vector<8x1xf32> to vector<8x64xf32>
    %30 = arith.subf %26, %29 : vector<8x64xf32>
    %31 = math.exp %30 : vector<8x64xf32>
    %cst_20 = arith.constant dense<0.000000e+00> : vector<8xf32>
    %32 = vector.multi_reduction <add>, %31, %cst_20 [1] : vector<8x64xf32> to vector<8xf32>
    %33 = vector.shape_cast %32 : vector<8xf32> to vector<8x1xf32>
    %34 = vector.broadcast %33 : vector<8x1xf32> to vector<8x64xf32>
    %35 = arith.divf %31, %34 : vector<8x64xf32>
    %c0_21 = arith.constant 0 : index
    %c0_22 = arith.constant 0 : index
    %36 = vector.load %arg10[%c0_21, %c0_22] : memref<8x64xf32, #tpu.memory_space<vmem>>, vector<8x64xf32>
    tpu.vector_store %arg10[%c0_21, %c0_22], %35 {strides = array<i32>} : memref<8x64xf32, #tpu.memory_space<vmem>>, vector<8x64xf32>,
    %37 = vector.shape_cast %35 : vector<8x64xf32> to vector<8x1x64xf32>
    "tpu.trace_start"() <{level = 10 : i32, message = "bqp,bpe->bqe"}> : () -> ()
    %cst_23 = arith.constant dense<0.000000e+00> : vector<8x1x128xf32>
    %38 = tpu.matmul %37, %0, %cst_23 {dimension_numbers = #tpu.dot_dimension_numbers<[2], [1], [1], [2], [0, 0, 0, 1, 1, 2], [0], [0]>} : vector<8x1x64xf32>, vector<8x64x128xf32>, vector<8x1x128xf32> -> vector<8x1x128xf32>
    "tpu.trace_stop"() : () -> ()
    %39 = vector.shape_cast %38 : vector<8x1x128xf32> to vector<8x128xf32>
    %c0_24 = arith.constant 0 : index
    %c0_25 = arith.constant 0 : index
    %40 = vector.load %arg9[%c0_24, %c0_25] : memref<8x128xf32, #tpu.memory_space<vmem>>, vector<8x128xf32>
    tpu.vector_store %arg9[%c0_24, %c0_25], %39 {strides = array<i32>} : memref<8x128xf32, #tpu.memory_space<vmem>>, vector<8x128xf32>,
    return
  }
  func.func @transform_0(%arg0: i32) -> (i32, i32, i32) {
    %c0_i32 = arith.constant 0 : i32
    %c0_i32_0 = arith.constant 0 : i32
    %c0_i32_1 = arith.constant 0 : i32
    return %arg0, %c0_i32, %c0_i32_0 : i32, i32, i32
  }
  func.func @transform_1(%arg0: i32) -> (i32, i32) {
    %c0_i32 = arith.constant 0 : i32
    %c0_i32_0 = arith.constant 0 : i32
    return %arg0, %c0_i32 : i32, i32
  }
  func.func @transform_2(%arg0: i32) -> (i32, i32) {
    %c0_i32 = arith.constant 0 : i32
    %c0_i32_0 = arith.constant 0 : i32
    %c0_i32_1 = arith.constant 0 : i32
    return %c0_i32, %c0_i32_0 : i32, i32
  }
  func.func @transform_3(%arg0: i32) -> (i32, i32) {
    %c0_i32 = arith.constant 0 : i32
    %c0_i32_0 = arith.constant 0 : i32
    %c0_i32_1 = arith.constant 0 : i32
    return %c0_i32, %c0_i32_0 : i32, i32
  }
  func.func @transform_4(%arg0: i32) -> (i32, i32) {
    %c0_i32 = arith.constant 0 : i32
    %c0_i32_0 = arith.constant 0 : i32
    %c0_i32_1 = arith.constant 0 : i32
    return %c0_i32, %c0_i32_0 : i32, i32
  }
  func.func @transform_5(%arg0: i32) -> (i32, i32) {
    %c0_i32 = arith.constant 0 : i32
    %c0_i32_0 = arith.constant 0 : i32
    %c0_i32_1 = arith.constant 0 : i32
    return %c0_i32, %c0_i32_0 : i32, i32
  }
  func.func @transform_6(%arg0: i32) -> (i32, i32) {
    %c0_i32 = arith.constant 0 : i32
    %c0_i32_0 = arith.constant 0 : i32
    %c0_i32_1 = arith.constant 0 : i32
    return %c0_i32, %c0_i32_0 : i32, i32
  }
  func.func @transform_7(%arg0: i32) -> (i32, i32) {
    %c0_i32 = arith.constant 0 : i32
    %c0_i32_0 = arith.constant 0 : i32
    %c0_i32_1 = arith.constant 0 : i32
    return %c0_i32, %c0_i32_0 : i32, i32
  }
  func.func @transform_8(%arg0: i32) -> (i32, i32) {
    %c0_i32 = arith.constant 0 : i32
    %c0_i32_0 = arith.constant 0 : i32
    return %arg0, %c0_i32 : i32, i32
  }
  func.func @transform_9(%arg0: i32) -> (i32, i32) {
    %c0_i32 = arith.constant 0 : i32
    %c0_i32_0 = arith.constant 0 : i32
    return %arg0, %c0_i32 : i32, i32
  }
}

</mosaic_0001>

<llo_original>
// kernel: tpu_custom_call.1
$region0: #{tpu_custom_call.1}
  #allocation0 [shape = 'u32[]', space=smem, size = 0x4, offset = 0x4, fixed_abs, tag = 'smem constant byte address 0x4 - core index']
  #allocation1 [shape = 'u32[72,128]{1,0:T(1,128)}', space=vmem, size = 0x9000, scoped, tag = 'internal scratch']
  #allocation2 [shape = 'f32[1,1]{1,0:T(1,128)S(1)}', space=vmem, size = 0x200, scoped, tag = 'scoped memory for tpu_custom_call.1']
  %s0 = inlined_call_operand.hbm [shape: f32[16,64,128], index: 0, kind: input, shape index: {}]
  %s1 = inlined_call_operand.hbm [shape: f32[16,128], index: 1, kind: input, shape index: {}]
  %s2 = inlined_call_operand.hbm [shape: f32[128,128], index: 2, kind: input, shape index: {}]
  %s3 = inlined_call_operand.vmem [shape: f32[1,128], index: 3, kind: input, shape index: {}]
  %s4 = inlined_call_operand.hbm [shape: f32[128,128], index: 4, kind: input, shape index: {}]
  %s5 = inlined_call_operand.vmem [shape: f32[1,128], index: 5, kind: input, shape index: {}]
  %s6 = inlined_call_operand.vmem [shape: f32[1,128], index: 6, kind: input, shape index: {}]
  %s7 = inlined_call_operand.<no memory space> [shape: f32[1,1], index: 7, kind: input, shape index: {}]
  %s8 = inlined_call_operand.hbm [shape: f32[16,128], index: 8, kind: output, shape index: {0}]
  %s9 = inlined_call_operand.hbm [shape: f32[16,64], index: 9, kind: output, shape index: {1}]
  %10 = xla_tuple %s8, %s9
  %s11 = sld [smem:[#allocation0]]
  $region89: #{tpu_custom_call.1} parent=0
    _
  %s13 = ssub.s32 1, %s11
  %s14 = scalar_select 0, %s13, %s11
  %v15 = vstv %s7
  %16 = vst [vmem:[#allocation2] sm:$0x1] %v15
  $region1: #{tpu_custom_call.1} parent=0
    #allocation3 [shape = 'u8[524288]{0}', space=vmem, size = 0x80000, scoped, tag = 'input window, operand 0']
    #allocation4 [shape = 's32[2]{0}', space=sflag, size = 0x8, scoped, tag = 'scoped memory for tpu_custom_call.1']
    #allocation5 [shape = 's32[2]{0}', space=sflag, size = 0x8, scoped, tag = 'scoped memory for tpu_custom_call.1']
    #allocation6 [shape = 'u8[8192]{0}', space=vmem, size = 0x2000, scoped, tag = 'input window, operand 1']
    #allocation7 [shape = 's32[2]{0}', space=sflag, size = 0x8, scoped, tag = 'scoped memory for tpu_custom_call.1']
    #allocation8 [shape = 'u8[65536]{0}', space=vmem, size = 0x10000, scoped, tag = 'input window, operand 2, single buffered']
    #allocation9 [shape = 'u8[65536]{0}', space=vmem, size = 0x10000, scoped, tag = 'input window, operand 4, single buffered']
    #allocation10 [shape = 's32[1]{0}', space=sflag, size = 0x4, scoped, tag = 'scoped memory for tpu_custom_call.1']
    #allocation11 [shape = 'u8[8192]{0}', space=vmem, size = 0x2000, scoped, tag = 'output window, operand 0']
    #allocation12 [shape = 'u8[8192]{0}', space=vmem, size = 0x2000, scoped, tag = 'output window, operand 1']
    #allocation13 [shape = 's32[2]{0}', space=sflag, size = 0x8, scoped, tag = 'scoped memory for tpu_custom_call.1']
    %17 = vsyncpa [#allocation4], 0
    %s18 = scalar_lea.sflag [#allocation4], 1
    %19 = vsyncpa %s18, 0
    %20 = vsyncpa [#allocation7], 0
    %s21 = scalar_lea.sflag [#allocation7], 1
    %22 = vsyncpa %s21, 0
    %23 = vsyncpa [#allocation10], 0
    %24 = vsyncpa [#allocation5], 0
    %s25 = scalar_lea.sflag [#allocation5], 1
    %26 = vsyncpa %s25, 0
    %27 = vsyncpa [#allocation13], 0
    %s28 = scalar_lea.sflag [#allocation13], 1
    %29 = vsyncpa %s28, 0
    loop: start=0, step=1, limit=4
    $region2: #{tpu_custom_call.1} parent=1 // loop_pre_header
      _
    $region3: #{tpu_custom_call.1} parent=1 // loop_header
      %s31 = sphi 0, %s35
      %p32 = scmp.ge.s32.totalorder %s31, 4
      %s41 = sphi 0, %s43
      %s44 = sphi 0, %s41
      %s45 = sphi 0, %s44
      %s61 = sphi 0, %s45
      %s67 = sphi 0, %s69
      %s70 = sphi 0, %s67
      %s71 = sphi 0, %s70
      %s87 = sphi 0, %s71
      %s91 = sphi 0, %s91
      %s93 = sphi 0, %s91
      %s94 = sphi 0, %s93
      %s108 = sphi 0, %s94
      %s112 = sphi 0, %s112
      %s114 = sphi 0, %s112
      %s115 = sphi 0, %s114
      %s129 = sphi 0, %s115
      %s133 = sphi 0, %s133
      %s135 = sphi 0, %s133
      %s136 = sphi 0, %s135
      %s150 = sphi 0, %s136
      %s154 = sphi 0, %s154
      %s156 = sphi 0, %s154
      %s157 = sphi 0, %s156
      %s171 = sphi 0, %s157
      %s175 = sphi 0, %s175
      %s177 = sphi 0, %s175
      %s178 = sphi 0, %s177
      %s192 = sphi 0, %s178
      %s196 = sphi 0, %s196
      %s198 = sphi 0, %s196
      %s199 = sphi 0, %s198
      %s213 = sphi 0, %s199
      %s219 = sphi 0, %s221
      %s222 = sphi 0, %s219
      %s223 = sphi 0, %s222
      %s239 = sphi 0, %s223
      %s245 = sphi 0, %s247
      %s248 = sphi 0, %s245
      %s249 = sphi 0, %s248
      %s265 = sphi 0, %s249
    $region4: #{tpu_custom_call.1} parent=1 // loop_header_branch
      %34 = sbr.rel (%p32) target = $region8
    $region5: #{tpu_custom_call.1} parent=1 // loop_body
      %s36 = ssub.s32 %s31, 1
      %s37 = ssub.s32 %s31, 2
      %s38 = sadd.s32 %s31, 1
      %s39 = ssub.s32 %s31, %s38
      %p40 = scmp.eq.s32.totalorder %s39, 0
      %s42 = sadd.s32 %s41, 1
      %s43 = scalar_select %p40, %s41, %s42
      %p46 = pneg %p40
      %p47 = scmp.eq.s32.totalorder %s31, 1
      %p48 = por %p46, %p47
      %p49 = scmp.ne.s32.totalorder %s41, %s44
      %p50 = scmp.eq.s32.totalorder %s31, 0
      %p51 = por %p49, %p50
      %p52 = scmp.ne.s32.totalorder %s41, %s44
      %p53 = scmp.eq.s32.totalorder %s36, 1
      %p54 = por %p52, %p53
      %p55 = scmp.ne.s32.totalorder %s44, %s45
      %p56 = scmp.eq.s32.totalorder %s36, 0
      %p57 = por %p55, %p56
      %p58 = scmp.ne.s32.totalorder %s44, %s45
      %p59 = scmp.eq.s32.totalorder %s37, 1
      %p60 = por %p58, %p59
      %p62 = scmp.ne.s32.totalorder %s45, %s61
      %p63 = scmp.eq.s32.totalorder %s37, 0
      %p64 = por %p62, %p63
      %s65 = ssub.s32 %s31, %s38
      %p66 = scmp.eq.s32.totalorder %s65, 0
      %s68 = sadd.s32 %s67, 1
      %s69 = scalar_select %p66, %s67, %s68
      %p72 = pneg %p66
      %p73 = scmp.eq.s32.totalorder %s31, 1
      %p74 = por %p72, %p73
      %p75 = scmp.ne.s32.totalorder %s67, %s70
      %p76 = scmp.eq.s32.totalorder %s31, 0
      %p77 = por %p75, %p76
      %p78 = scmp.ne.s32.totalorder %s67, %s70
      %p79 = scmp.eq.s32.totalorder %s36, 1
      %p80 = por %p78, %p79
      %p81 = scmp.ne.s32.totalorder %s70, %s71
      %p82 = scmp.eq.s32.totalorder %s36, 0
      %p83 = por %p81, %p82
      %p84 = scmp.ne.s32.totalorder %s70, %s71
      %p85 = scmp.eq.s32.totalorder %s37, 1
      %p86 = por %p84, %p85
      %p88 = scmp.ne.s32.totalorder %s71, %s87
      %p89 = scmp.eq.s32.totalorder %s37, 0
      %p90 = por %p88, %p89
      %s92 = sadd.s32 %s91, 1
      %p95 = scmp.eq.s32.totalorder %s31, 1
      %p96 = scmp.ne.s32.totalorder %s91, %s93
      %p97 = scmp.eq.s32.totalorder %s31, 0
      %p98 = por %p96, %p97
      %p99 = scmp.ne.s32.totalorder %s91, %s93
      %p100 = scmp.eq.s32.totalorder %s36, 1
      %p101 = por %p99, %p100
      %p102 = scmp.ne.s32.totalorder %s93, %s94
      %p103 = scmp.eq.s32.totalorder %s36, 0
      %p104 = por %p102, %p103
      %p105 = scmp.ne.s32.totalorder %s93, %s94
      %p106 = scmp.eq.s32.totalorder %s37, 1
      %p107 = por %p105, %p106
      %p109 = scmp.ne.s32.totalorder %s94, %s108
      %p110 = scmp.eq.s32.totalorder %s37, 0
      %p111 = por %p109, %p110
      %s113 = sadd.s32 %s112, 1
      %p116 = scmp.eq.s32.totalorder %s31, 1
      %p117 = scmp.ne.s32.totalorder %s112, %s114
      %p118 = scmp.eq.s32.totalorder %s31, 0
      %p119 = por %p117, %p118
      %p120 = scmp.ne.s32.totalorder %s112, %s114
      %p121 = scmp.eq.s32.totalorder %s36, 1
      %p122 = por %p120, %p121
      %p123 = scmp.ne.s32.totalorder %s114, %s115
      %p124 = scmp.eq.s32.totalorder %s36, 0
      %p125 = por %p123, %p124
      %p126 = scmp.ne.s32.totalorder %s114, %s115
      %p127 = scmp.eq.s32.totalorder %s37, 1
      %p128 = por %p126, %p127
      %p130 = scmp.ne.s32.totalorder %s115, %s129
      %p131 = scmp.eq.s32.totalorder %s37, 0
      %p132 = por %p130, %p131
      %s134 = sadd.s32 %s133, 1
      %p137 = scmp.eq.s32.totalorder %s31, 1
      %p138 = scmp.ne.s32.totalorder %s133, %s135
      %p139 = scmp.eq.s32.totalorder %s31, 0
      %p140 = por %p138, %p139
      %p141 = scmp.ne.s32.totalorder %s133, %s135
      %p142 = scmp.eq.s32.totalorder %s36, 1
      %p143 = por %p141, %p142
      %p144 = scmp.ne.s32.totalorder %s135, %s136
      %p145 = scmp.eq.s32.totalorder %s36, 0
      %p146 = por %p144, %p145
      %p147 = scmp.ne.s32.totalorder %s135, %s136
      %p148 = scmp.eq.s32.totalorder %s37, 1
      %p149 = por %p147, %p148
      %p151 = scmp.ne.s32.totalorder %s136, %s150
      %p152 = scmp.eq.s32.totalorder %s37, 0
      %p153 = por %p151, %p152
      %s155 = sadd.s32 %s154, 1
      %p158 = scmp.eq.s32.totalorder %s31, 1
      %p159 = scmp.ne.s32.totalorder %s154, %s156
      %p160 = scmp.eq.s32.totalorder %s31, 0
      %p161 = por %p159, %p160
      %p162 = scmp.ne.s32.totalorder %s154, %s156
      %p163 = scmp.eq.s32.totalorder %s36, 1
      %p164 = por %p162, %p163
      %p165 = scmp.ne.s32.totalorder %s156, %s157
      %p166 = scmp.eq.s32.totalorder %s36, 0
      %p167 = por %p165, %p166
      %p168 = scmp.ne.s32.totalorder %s156, %s157
      %p169 = scmp.eq.s32.totalorder %s37, 1
      %p170 = por %p168, %p169
      %p172 = scmp.ne.s32.totalorder %s157, %s171
      %p173 = scmp.eq.s32.totalorder %s37, 0
      %p174 = por %p172, %p173
      %s176 = sadd.s32 %s175, 1
      %p179 = scmp.eq.s32.totalorder %s31, 1
      %p180 = scmp.ne.s32.totalorder %s175, %s177
      %p181 = scmp.eq.s32.totalorder %s31, 0
      %p182 = por %p180, %p181
      %p183 = scmp.ne.s32.totalorder %s175, %s177
      %p184 = scmp.eq.s32.totalorder %s36, 1
      %p185 = por %p183, %p184
      %p186 = scmp.ne.s32.totalorder %s177, %s178
      %p187 = scmp.eq.s32.totalorder %s36, 0
      %p188 = por %p186, %p187
      %p189 = scmp.ne.s32.totalorder %s177, %s178
      %p190 = scmp.eq.s32.totalorder %s37, 1
      %p191 = por %p189, %p190
      %p193 = scmp.ne.s32.totalorder %s178, %s192
      %p194 = scmp.eq.s32.totalorder %s37, 0
      %p195 = por %p193, %p194
      %s197 = sadd.s32 %s196, 1
      %p200 = scmp.eq.s32.totalorder %s31, 1
      %p201 = scmp.ne.s32.totalorder %s196, %s198
      %p202 = scmp.eq.s32.totalorder %s31, 0
      %p203 = por %p201, %p202
      %p204 = scmp.ne.s32.totalorder %s196, %s198
      %p205 = scmp.eq.s32.totalorder %s36, 1
      %p206 = por %p204, %p205
      %p207 = scmp.ne.s32.totalorder %s198, %s199
      %p208 = scmp.eq.s32.totalorder %s36, 0
      %p209 = por %p207, %p208
      %p210 = scmp.ne.s32.totalorder %s198, %s199
      %p211 = scmp.eq.s32.totalorder %s37, 1
      %p212 = por %p210, %p211
      %p214 = scmp.ne.s32.totalorder %s199, %s213
      %p215 = scmp.eq.s32.totalorder %s37, 0
      %p216 = por %p214, %p215
      %s217 = ssub.s32 %s31, %s38
      %p218 = scmp.eq.s32.totalorder %s217, 0
      %s220 = sadd.s32 %s219, 1
      %s221 = scalar_select %p218, %s219, %s220
      %p224 = pneg %p218
      %p225 = scmp.eq.s32.totalorder %s31, 1
      %p226 = por %p224, %p225
      %p227 = scmp.ne.s32.totalorder %s219, %s222
      %p228 = scmp.eq.s32.totalorder %s31, 0
      %p229 = por %p227, %p228
      %p230 = scmp.ne.s32.totalorder %s219, %s222
      %p231 = scmp.eq.s32.totalorder %s36, 1
      %p232 = por %p230, %p231
      %p233 = scmp.ne.s32.totalorder %s222, %s223
      %p234 = scmp.eq.s32.totalorder %s36, 0
      %p235 = por %p233, %p234
      %p236 = scmp.ne.s32.totalorder %s222, %s223
      %p237 = scmp.eq.s32.totalorder %s37, 1
      %p238 = por %p236, %p237
      %p240 = scmp.ne.s32.totalorder %s223, %s239
      %p241 = scmp.eq.s32.totalorder %s37, 0
      %p242 = por %p240, %p241
      %s243 = ssub.s32 %s31, %s38
      %p244 = scmp.eq.s32.totalorder %s243, 0
      %s246 = sadd.s32 %s245, 1
      %s247 = scalar_select %p244, %s245, %s246
      %p250 = pneg %p244
      %p251 = scmp.eq.s32.totalorder %s31, 1
      %p252 = por %p250, %p251
      %p253 = scmp.ne.s32.totalorder %s245, %s248
      %p254 = scmp.eq.s32.totalorder %s31, 0
      %p255 = por %p253, %p254
      %p256 = scmp.ne.s32.totalorder %s245, %s248
      %p257 = scmp.eq.s32.totalorder %s36, 1
      %p258 = por %p256, %p257
      %p259 = scmp.ne.s32.totalorder %s248, %s249
      %p260 = scmp.eq.s32.totalorder %s36, 0
      %p261 = por %p259, %p260
      %p262 = scmp.ne.s32.totalorder %s248, %s249
      %p263 = scmp.eq.s32.totalorder %s37, 1
      %p264 = por %p262, %p263
      %p266 = scmp.ne.s32.totalorder %s249, %s265
      %p267 = scmp.eq.s32.totalorder %s37, 0
      %p268 = por %p266, %p267
      %p269 = scmp.le.s32.totalorder 1, %s31
      %p270 = scmp.lt.s32.totalorder %s31, 3
      %p271 = pnand %p269, %p270
      %p272 = pneg %p271
      // Predicated region
      $region9: #{tpu_custom_call.1} parent=5 // pred_check
        _
      $region10: #{tpu_custom_call.1} parent=5 // pred_check_branch
        %274 = sbr.rel (%p271) target = $region12
      $region11: #{tpu_custom_call.1} parent=5 // pred_region
        %s275 = ssub.s32 %s31, 1
        // Predicated region
        $region13: #{tpu_custom_call.1} parent=11 // pred_check
          %p276 = pneg %p104
        $region14: #{tpu_custom_call.1} parent=11 // pred_check_branch
          %278 = sbr.rel (%p276) target = $region16
        $region15: #{tpu_custom_call.1} parent=11 // pred_region
          %280 = vsyncadd [#allocation7], 0
          %s281 = sshll.u32 %s2, 4
          %s282 = int_to_ptr.hbm [resolvable:$true] %s281
          %s283 = sshll.u32 [#allocation8], 4
          %s284 = int_to_ptr.vmem [resolvable:$true] %s283
          %289 = dma.hbm_to_vmem [thread:$0]  %s282, 2048, %s284, [#allocation7], 128, 128, 8
        $region16: #{tpu_custom_call.1} parent=11 // pred_fallthru
          _
        // Predicated region
        $region17: #{tpu_custom_call.1} parent=11 // pred_check
          %p290 = pneg %p125
        $region18: #{tpu_custom_call.1} parent=11 // pred_check_branch
          %292 = sbr.rel (%p290) target = $region20
        $region19: #{tpu_custom_call.1} parent=11 // pred_region
          _
        $region20: #{tpu_custom_call.1} parent=11 // pred_fallthru
          _
        // Predicated region
        $region21: #{tpu_custom_call.1} parent=11 // pred_check
          %p293 = pneg %p146
        $region22: #{tpu_custom_call.1} parent=11 // pred_check_branch
          %295 = sbr.rel (%p293) target = $region24
        $region23: #{tpu_custom_call.1} parent=11 // pred_region
          %297 = vsyncadd [#allocation10], 0
          %s298 = sshll.u32 %s4, 4
          %s299 = int_to_ptr.hbm [resolvable:$true] %s298
          %s300 = sshll.u32 [#allocation9], 4
          %s301 = int_to_ptr.vmem [resolvable:$true] %s300
          %306 = dma.hbm_to_vmem [thread:$0]  %s299, 2048, %s301, [#allocation10], 128, 128, 8
        $region24: #{tpu_custom_call.1} parent=11 // pred_fallthru
          _
        // Predicated region
        $region25: #{tpu_custom_call.1} parent=11 // pred_check
          %p307 = pneg %p167
        $region26: #{tpu_custom_call.1} parent=11 // pred_check_branch
          %309 = sbr.rel (%p307) target = $region28
        $region27: #{tpu_custom_call.1} parent=11 // pred_region
          _
        $region28: #{tpu_custom_call.1} parent=11 // pred_fallthru
          _
        // Predicated region
        $region29: #{tpu_custom_call.1} parent=11 // pred_check
          %p310 = pneg %p188
        $region30: #{tpu_custom_call.1} parent=11 // pred_check_branch
          %312 = sbr.rel (%p310) target = $region32
        $region31: #{tpu_custom_call.1} parent=11 // pred_region
          _
        $region32: #{tpu_custom_call.1} parent=11 // pred_fallthru
          _
        // Predicated region
        $region33: #{tpu_custom_call.1} parent=11 // pred_check
          %p313 = pneg %p209
        $region34: #{tpu_custom_call.1} parent=11 // pred_check_branch
          %315 = sbr.rel (%p313) target = $region36
        $region35: #{tpu_custom_call.1} parent=11 // pred_region
          _
        $region36: #{tpu_custom_call.1} parent=11 // pred_fallthru
          _
      $region12: #{tpu_custom_call.1} parent=5 // pred_fallthru
        _
      %p316 = scmp.lt.s32.totalorder %s31, 2
      // Predicated region
      $region37: #{tpu_custom_call.1} parent=5 // pred_check
        %p317 = pneg %p316
      $region38: #{tpu_custom_call.1} parent=5 // pred_check_branch
        %319 = sbr.rel (%p317) target = $region40
      $region39: #{tpu_custom_call.1} parent=5 // pred_region
        // Predicated region
        $region41: #{tpu_custom_call.1} parent=39 // pred_check
          %p320 = pneg %p51
        $region42: #{tpu_custom_call.1} parent=39 // pred_check_branch
          %322 = sbr.rel (%p320) target = $region44
        $region43: #{tpu_custom_call.1} parent=39 // pred_region
          %s323 = sand.u32 %s41, 1
          %s324 = scalar_lea.sflag [#allocation4], %s323
          %s325 = sand.u32 %s41, 1
          %s326 = smul.addr %s325, 512
          %s327 = scalar_lea.vmem [#allocation3], %s326
          %s328 = smul.u32 8, %s31
          %330 = vsyncadd %s324, 0
          %s331 = smul.addr %s328, 8
          %s332 = smul.addr %s331, 8
          %s333 = scalar_lea.hbm %s0, %s332
          %s334 = sshll.u32 %s333, 4
          %s335 = int_to_ptr.hbm [resolvable:$true] %s334
          %s336 = sshll.u32 %s327, 4
          %s337 = int_to_ptr.vmem [resolvable:$true] %s336
          %342 = dma.hbm_to_vmem [thread:$0]  %s335, 8192, %s337, %s324, 128, 128, 8
        $region44: #{tpu_custom_call.1} parent=39 // pred_fallthru
          _
        // Predicated region
        $region45: #{tpu_custom_call.1} parent=39 // pred_check
          %p343 = pneg %p77
        $region46: #{tpu_custom_call.1} parent=39 // pred_check_branch
          %345 = sbr.rel (%p343) target = $region48
        $region47: #{tpu_custom_call.1} parent=39 // pred_region
          %s346 = sand.u32 %s31, 1
          %s347 = scalar_lea.sflag [#allocation7], %s346
          %s348 = sand.u32 %s67, 1
          %s349 = smul.addr %s348, 8
          %s350 = scalar_lea.vmem [#allocation6], %s349
          %352 = vsyncadd %s347, 0
          %s353 = smul.addr %s31, 8
          %s354 = scalar_lea.hbm %s1, %s353
          %s356 = sshll.u32 %s354, 4
          %s357 = int_to_ptr.hbm [resolvable:$true] %s356
          %s358 = sshll.u32 %s350, 4
          %s359 = int_to_ptr.vmem [resolvable:$true] %s358
          %361 = dma.hbm_to_vmem [thread:$0]  %s357, 128, %s359, %s347
        $region48: #{tpu_custom_call.1} parent=39 // pred_fallthru
          _
      $region40: #{tpu_custom_call.1} parent=5 // pred_fallthru
        _
      %p362 = scmp.le.s32.totalorder 1, %s31
      %p363 = scmp.lt.s32.totalorder %s31, 3
      %p364 = pnand %p362, %p363
      %p365 = pneg %p364
      // Predicated region
      $region49: #{tpu_custom_call.1} parent=5 // pred_check
        _
      $region50: #{tpu_custom_call.1} parent=5 // pred_check_branch
        %367 = sbr.rel (%p364) target = $region52
      $region51: #{tpu_custom_call.1} parent=5 // pred_region
        %s368 = ssub.s32 %s31, 1
        %s369 = sand.u32 %s44, 1
        %s370 = scalar_lea.sflag [#allocation4], %s369
        %s371 = sand.u32 %s44, 1
        %s372 = smul.addr %s371, 512
        %s373 = scalar_lea.vmem [#allocation3], %s372
        // Predicated region
        $region53: #{tpu_custom_call.1} parent=51 // pred_check
          %p374 = pneg %p57
        $region54: #{tpu_custom_call.1} parent=51 // pred_check_branch
          %376 = sbr.rel (%p374) target = $region56
        $region55: #{tpu_custom_call.1} parent=51 // pred_region
          %378 = dma.done %s370, 8192
        $region56: #{tpu_custom_call.1} parent=51 // pred_fallthru
          _
        %s379 = sand.u32 %s36, 1
        %s380 = scalar_lea.sflag [#allocation7], %s379
        %s381 = sand.u32 %s70, 1
        %s382 = smul.addr %s381, 8
        %s383 = scalar_lea.vmem [#allocation6], %s382
        // Predicated region
        $region57: #{tpu_custom_call.1} parent=51 // pred_check
          %p384 = pneg %p83
        $region58: #{tpu_custom_call.1} parent=51 // pred_check_branch
          %386 = sbr.rel (%p384) target = $region60
        $region59: #{tpu_custom_call.1} parent=51 // pred_region
          %388 = dma.done %s380, 128
        $region60: #{tpu_custom_call.1} parent=51 // pred_fallthru
          _
        // Predicated region
        $region61: #{tpu_custom_call.1} parent=51 // pred_check
          %p389 = pneg %p104
        $region62: #{tpu_custom_call.1} parent=51 // pred_check_branch
          %391 = sbr.rel (%p389) target = $region64
        $region63: #{tpu_custom_call.1} parent=51 // pred_region
          %393 = dma.done [#allocation7], 2048
        $region64: #{tpu_custom_call.1} parent=51 // pred_fallthru
          _
        // Predicated region
        $region65: #{tpu_custom_call.1} parent=51 // pred_check
          %p394 = pneg %p146
        $region66: #{tpu_custom_call.1} parent=51 // pred_check_branch
          %396 = sbr.rel (%p394) target = $region68
        $region67: #{tpu_custom_call.1} parent=51 // pred_region
          %398 = dma.done [#allocation10], 2048
        $region68: #{tpu_custom_call.1} parent=51 // pred_fallthru
          _
        %s399 = sand.u32 %s44, 1
        %s400 = scalar_lea.sflag [#allocation4], %s399
        %s401 = sand.u32 %s44, 1
        %s402 = smul.addr %s401, 512
        %s403 = scalar_lea.vmem [#allocation3], %s402
        %p404 = pneg %p57
        %p405 = pneg %p54
        %s406 = sand.u32 %s36, 1
        %s407 = scalar_lea.sflag [#allocation7], %s406
        %s408 = sand.u32 %s70, 1
        %s409 = smul.addr %s408, 8
        %s410 = scalar_lea.vmem [#allocation6], %s409
        %p411 = pneg %p83
        %p412 = pneg %p80
        %p413 = pneg %p104
        %p414 = pneg %p101
        %p415 = pneg %p125
        %p416 = pneg %p122
        %p417 = pneg %p146
        %p418 = pneg %p143
        %p419 = pneg %p167
        %p420 = pneg %p164
        %p421 = pneg %p188
        %p422 = pneg %p185
        %p423 = pneg %p209
        %p424 = pneg %p206
        %p425 = pneg %p235
        %p426 = pneg %p232
        %s427 = sand.u32 %s222, 1
        %s428 = scalar_lea.sflag [#allocation5], %s427
        %s429 = sand.u32 %s222, 1
        %s430 = smul.addr %s429, 8
        %s431 = scalar_lea.vmem [#allocation11], %s430
        %p432 = pneg %p261
        %p433 = pneg %p258
        %s434 = sand.u32 %s248, 1
        %s435 = scalar_lea.sflag [#allocation13], %s434
        %s436 = sand.u32 %s248, 1
        %s437 = smul.addr %s436, 8
        %s438 = scalar_lea.vmem [#allocation12], %s437
        %s439 = smul.u32 8, %s36
        %v440 = vld [vmem:[%s373] sm:$0xff]
        %v441 = vld [vmem:[%s373 + $0x8] sm:$0xff]
        %v442 = vld [vmem:[%s373 + $0x10] sm:$0xff]
        %v443 = vld [vmem:[%s373 + $0x18] sm:$0xff]
        %v444 = vld [vmem:[%s373 + $0x20] sm:$0xff]
        %v445 = vld [vmem:[%s373 + $0x28] sm:$0xff]
        %v446 = vld [vmem:[%s373 + $0x30] sm:$0xff]
        %v447 = vld [vmem:[%s373 + $0x38] sm:$0xff]
        %v448 = vld [vmem:[%s373 + $0x40] sm:$0xff]
        %v449 = vld [vmem:[%s373 + $0x48] sm:$0xff]
        %v450 = vld [vmem:[%s373 + $0x50] sm:$0xff]
        %v451 = vld [vmem:[%s373 + $0x58] sm:$0xff]
        %v452 = vld [vmem:[%s373 + $0x60] sm:$0xff]
        %v453 = vld [vmem:[%s373 + $0x68] sm:$0xff]
        %v454 = vld [vmem:[%s373 + $0x70] sm:$0xff]
        %v455 = vld [vmem:[%s373 + $0x78] sm:$0xff]
        %v456 = vld [vmem:[%s373 + $0x80] sm:$0xff]
        %v457 = vld [vmem:[%s373 + $0x88] sm:$0xff]
        %v458 = vld [vmem:[%s373 + $0x90] sm:$0xff]
        %v459 = vld [vmem:[%s373 + $0x98] sm:$0xff]
        %v460 = vld [vmem:[%s373 + $0xa0] sm:$0xff]
        %v461 = vld [vmem:[%s373 + $0xa8] sm:$0xff]
        %v462 = vld [vmem:[%s373 + $0xb0] sm:$0xff]
        %v463 = vld [vmem:[%s373 + $0xb8] sm:$0xff]
        %v464 = vld [vmem:[%s373 + $0xc0] sm:$0xff]
        %v465 = vld [vmem:[%s373 + $0xc8] sm:$0xff]
        %v466 = vld [vmem:[%s373 + $0xd0] sm:$0xff]
        %v467 = vld [vmem:[%s373 + $0xd8] sm:$0xff]
        %v468 = vld [vmem:[%s373 + $0xe0] sm:$0xff]
        %v469 = vld [vmem:[%s373 + $0xe8] sm:$0xff]
        %v470 = vld [vmem:[%s373 + $0xf0] sm:$0xff]
        %v471 = vld [vmem:[%s373 + $0xf8] sm:$0xff]
        %v472 = vld [vmem:[%s373 + $0x100] sm:$0xff]
        %v473 = vld [vmem:[%s373 + $0x108] sm:$0xff]
        %v474 = vld [vmem:[%s373 + $0x110] sm:$0xff]
        %v475 = vld [vmem:[%s373 + $0x118] sm:$0xff]
        %v476 = vld [vmem:[%s373 + $0x120] sm:$0xff]
        %v477 = vld [vmem:[%s373 + $0x128] sm:$0xff]
        %v478 = vld [vmem:[%s373 + $0x130] sm:$0xff]
        %v479 = vld [vmem:[%s373 + $0x138] sm:$0xff]
        %v480 = vld [vmem:[%s373 + $0x140] sm:$0xff]
        %v481 = vld [vmem:[%s373 + $0x148] sm:$0xff]
        %v482 = vld [vmem:[%s373 + $0x150] sm:$0xff]
        %v483 = vld [vmem:[%s373 + $0x158] sm:$0xff]
        %v484 = vld [vmem:[%s373 + $0x160] sm:$0xff]
        %v485 = vld [vmem:[%s373 + $0x168] sm:$0xff]
        %v486 = vld [vmem:[%s373 + $0x170] sm:$0xff]
        %v487 = vld [vmem:[%s373 + $0x178] sm:$0xff]
        %v488 = vld [vmem:[%s373 + $0x180] sm:$0xff]
        %v489 = vld [vmem:[%s373 + $0x188] sm:$0xff]
        %v490 = vld [vmem:[%s373 + $0x190] sm:$0xff]
        %v491 = vld [vmem:[%s373 + $0x198] sm:$0xff]
        %v492 = vld [vmem:[%s373 + $0x1a0] sm:$0xff]
        %v493 = vld [vmem:[%s373 + $0x1a8] sm:$0xff]
        %v494 = vld [vmem:[%s373 + $0x1b0] sm:$0xff]
        %v495 = vld [vmem:[%s373 + $0x1b8] sm:$0xff]
        %v496 = vld [vmem:[%s373 + $0x1c0] sm:$0xff]
        %v497 = vld [vmem:[%s373 + $0x1c8] sm:$0xff]
        %v498 = vld [vmem:[%s373 + $0x1d0] sm:$0xff]
        %v499 = vld [vmem:[%s373 + $0x1d8] sm:$0xff]
        %v500 = vld [vmem:[%s373 + $0x1e0] sm:$0xff]
        %v501 = vld [vmem:[%s373 + $0x1e8] sm:$0xff]
        %v502 = vld [vmem:[%s373 + $0x1f0] sm:$0xff]
        %v503 = vld [vmem:[%s373 + $0x1f8] sm:$0xff]
        %v504 = vld [vmem:[#allocation8] sm:$0xff]
        %v505 = vld [vmem:[#allocation8 + $0x8] sm:$0xff]
        %v506 = vld [vmem:[#allocation8 + $0x10] sm:$0xff]
        %v507 = vld [vmem:[#allocation8 + $0x18] sm:$0xff]
        %v508 = vld [vmem:[#allocation8 + $0x20] sm:$0xff]
        %v509 = vld [vmem:[#allocation8 + $0x28] sm:$0xff]
        %v510 = vld [vmem:[#allocation8 + $0x30] sm:$0xff]
        %v511 = vld [vmem:[#allocation8 + $0x38] sm:$0xff]
        %v512 = vld [vmem:[#allocation8 + $0x40] sm:$0xff]
        %v513 = vld [vmem:[#allocation8 + $0x48] sm:$0xff]
        %v514 = vld [vmem:[#allocation8 + $0x50] sm:$0xff]
        %v515 = vld [vmem:[#allocation8 + $0x58] sm:$0xff]
        %v516 = vld [vmem:[#allocation8 + $0x60] sm:$0xff]
        %v517 = vld [vmem:[#allocation8 + $0x68] sm:$0xff]
        %v518 = vld [vmem:[#allocation8 + $0x70] sm:$0xff]
        %v519 = vld [vmem:[#allocation8 + $0x78] sm:$0xff]
        %v520 = vld [vmem:[%s3] sm:$0x1]
        %v522 = vperm.slane %v520, 0
        %524 = vmatpush.msra.mxu0 %v519
        %525 = vmatpush.msra.mxu0 %v518
        %526 = vmatpush.msra.mxu0 %v517
        %527 = vmatpush.msra.mxu0 %v516
        %528 = vmatpush.msra.mxu0 %v515
        %529 = vmatpush.msra.mxu0 %v514
        %530 = vmatpush.msra.mxu0 %v513
        %531 = vmatpush.msra.mxu0 %v512
        %532 = vmatpush.msra.mxu0 %v511
        %533 = vmatpush.msra.mxu0 %v510
        %534 = vmatpush.msra.mxu0 %v509
        %535 = vmatpush.msra.mxu0 %v508
        %536 = vmatpush.msra.mxu0 %v507
        %537 = vmatpush.msra.mxu0 %v506
        %538 = vmatpush.msra.mxu0 %v505
        %539 = vmatpush.msra.mxu0 %v504
        %540 = vmatmul.f32.gmra.mxu0 %v440
        %v541 = vpop.f32.mrf.mxu0
        %v542 = vadd.f32 %v522, %v541
        %543 = vmatmul.f32.gmra.mxu0 %v441
        %v544 = vpop.f32.mrf.mxu0
        %v545 = vadd.f32 %v522, %v544
        %546 = vmatmul.f32.gmra.mxu0 %v442
        %v547 = vpop.f32.mrf.mxu0
        %v548 = vadd.f32 %v522, %v547
        %549 = vmatmul.f32.gmra.mxu0 %v443
        %v550 = vpop.f32.mrf.mxu0
        %v551 = vadd.f32 %v522, %v550
        %552 = vmatmul.f32.gmra.mxu0 %v444
        %v553 = vpop.f32.mrf.mxu0
        %v554 = vadd.f32 %v522, %v553
        %555 = vmatmul.f32.gmra.mxu0 %v445
        %v556 = vpop.f32.mrf.mxu0
        %v557 = vadd.f32 %v522, %v556
        %558 = vmatmul.f32.gmra.mxu0 %v446
        %v559 = vpop.f32.mrf.mxu0
        %v560 = vadd.f32 %v522, %v559
        %561 = vmatmul.f32.gmra.mxu0 %v447
        %v562 = vpop.f32.mrf.mxu0
        %v563 = vadd.f32 %v522, %v562
        %564 = vmatmul.f32.gmra.mxu0 %v448
        %v565 = vpop.f32.mrf.mxu0
        %v566 = vadd.f32 %v522, %v565
        %567 = vmatmul.f32.gmra.mxu0 %v449
        %v568 = vpop.f32.mrf.mxu0
        %v569 = vadd.f32 %v522, %v568
        %570 = vmatmul.f32.gmra.mxu0 %v450
        %v571 = vpop.f32.mrf.mxu0
        %v572 = vadd.f32 %v522, %v571
        %573 = vmatmul.f32.gmra.mxu0 %v451
        %v574 = vpop.f32.mrf.mxu0
        %v575 = vadd.f32 %v522, %v574
        %576 = vmatmul.f32.gmra.mxu0 %v452
        %v577 = vpop.f32.mrf.mxu0
        %v578 = vadd.f32 %v522, %v577
        %579 = vmatmul.f32.gmra.mxu0 %v453
        %v580 = vpop.f32.mrf.mxu0
        %v581 = vadd.f32 %v522, %v580
        %582 = vmatmul.f32.gmra.mxu0 %v454
        %v583 = vpop.f32.mrf.mxu0
        %v584 = vadd.f32 %v522, %v583
        %585 = vmatmul.f32.gmra.mxu0 %v455
        %v586 = vpop.f32.mrf.mxu0
        %v587 = vadd.f32 %v522, %v586
        %588 = vmatmul.f32.gmra.mxu0 %v456
        %v589 = vpop.f32.mrf.mxu0
        %v590 = vadd.f32 %v522, %v589
        %591 = vmatmul.f32.gmra.mxu0 %v457
        %v592 = vpop.f32.mrf.mxu0
        %v593 = vadd.f32 %v522, %v592
        %594 = vmatmul.f32.gmra.mxu0 %v458
        %v595 = vpop.f32.mrf.mxu0
        %v596 = vadd.f32 %v522, %v595
        %597 = vmatmul.f32.gmra.mxu0 %v459
        %v598 = vpop.f32.mrf.mxu0
        %v599 = vadd.f32 %v522, %v598
        %600 = vmatmul.f32.gmra.mxu0 %v460
        %v601 = vpop.f32.mrf.mxu0
        %v602 = vadd.f32 %v522, %v601
        %603 = vmatmul.f32.gmra.mxu0 %v461
        %v604 = vpop.f32.mrf.mxu0
        %v605 = vadd.f32 %v522, %v604
        %606 = vmatmul.f32.gmra.mxu0 %v462
        %v607 = vpop.f32.mrf.mxu0
        %v608 = vadd.f32 %v522, %v607
        %609 = vmatmul.f32.gmra.mxu0 %v463
        %v610 = vpop.f32.mrf.mxu0
        %v611 = vadd.f32 %v522, %v610
        %612 = vmatmul.f32.gmra.mxu0 %v464
        %v613 = vpop.f32.mrf.mxu0
        %v614 = vadd.f32 %v522, %v613
        %615 = vmatmul.f32.gmra.mxu0 %v465
        %v616 = vpop.f32.mrf.mxu0
        %v617 = vadd.f32 %v522, %v616
        %618 = vmatmul.f32.gmra.mxu0 %v466
        %v619 = vpop.f32.mrf.mxu0
        %v620 = vadd.f32 %v522, %v619
        %621 = vmatmul.f32.gmra.mxu0 %v467
        %v622 = vpop.f32.mrf.mxu0
        %v623 = vadd.f32 %v522, %v622
        %624 = vmatmul.f32.gmra.mxu0 %v468
        %v625 = vpop.f32.mrf.mxu0
        %v626 = vadd.f32 %v522, %v625
        %627 = vmatmul.f32.gmra.mxu0 %v469
        %v628 = vpop.f32.mrf.mxu0
        %v629 = vadd.f32 %v522, %v628
        %630 = vmatmul.f32.gmra.mxu0 %v470
        %v631 = vpop.f32.mrf.mxu0
        %v632 = vadd.f32 %v522, %v631
        %633 = vmatmul.f32.gmra.mxu0 %v471
        %v634 = vpop.f32.mrf.mxu0
        %v635 = vadd.f32 %v522, %v634
        %636 = vmatmul.f32.gmra.mxu0 %v472
        %v637 = vpop.f32.mrf.mxu0
        %v638 = vadd.f32 %v522, %v637
        %639 = vmatmul.f32.gmra.mxu0 %v473
        %v640 = vpop.f32.mrf.mxu0
        %v641 = vadd.f32 %v522, %v640
        %642 = vmatmul.f32.gmra.mxu0 %v474
        %v643 = vpop.f32.mrf.mxu0
        %v644 = vadd.f32 %v522, %v643
        %645 = vmatmul.f32.gmra.mxu0 %v475
        %v646 = vpop.f32.mrf.mxu0
        %v647 = vadd.f32 %v522, %v646
        %648 = vmatmul.f32.gmra.mxu0 %v476
        %v649 = vpop.f32.mrf.mxu0
        %v650 = vadd.f32 %v522, %v649
        %651 = vmatmul.f32.gmra.mxu0 %v477
        %v652 = vpop.f32.mrf.mxu0
        %v653 = vadd.f32 %v522, %v652
        %654 = vmatmul.f32.gmra.mxu0 %v478
        %v655 = vpop.f32.mrf.mxu0
        %v656 = vadd.f32 %v522, %v655
        %657 = vmatmul.f32.gmra.mxu0 %v479
        %v658 = vpop.f32.mrf.mxu0
        %v659 = vadd.f32 %v522, %v658
        %660 = vmatmul.f32.gmra.mxu0 %v480
        %v661 = vpop.f32.mrf.mxu0
        %v662 = vadd.f32 %v522, %v661
        %663 = vmatmul.f32.gmra.mxu0 %v481
        %v664 = vpop.f32.mrf.mxu0
        %v665 = vadd.f32 %v522, %v664
        %666 = vmatmul.f32.gmra.mxu0 %v482
        %v667 = vpop.f32.mrf.mxu0
        %v668 = vadd.f32 %v522, %v667
        %669 = vmatmul.f32.gmra.mxu0 %v483
        %v670 = vpop.f32.mrf.mxu0
        %v671 = vadd.f32 %v522, %v670
        %672 = vmatmul.f32.gmra.mxu0 %v484
        %v673 = vpop.f32.mrf.mxu0
        %v674 = vadd.f32 %v522, %v673
        %675 = vmatmul.f32.gmra.mxu0 %v485
        %v676 = vpop.f32.mrf.mxu0
        %v677 = vadd.f32 %v522, %v676
        %678 = vmatmul.f32.gmra.mxu0 %v486
        %v679 = vpop.f32.mrf.mxu0
        %v680 = vadd.f32 %v522, %v679
        %681 = vmatmul.f32.gmra.mxu0 %v487
        %v682 = vpop.f32.mrf.mxu0
        %v683 = vadd.f32 %v522, %v682
        %684 = vmatmul.f32.gmra.mxu0 %v488
        %v685 = vpop.f32.mrf.mxu0
        %v686 = vadd.f32 %v522, %v685
        %687 = vmatmul.f32.gmra.mxu0 %v489
        %v688 = vpop.f32.mrf.mxu0
        %v689 = vadd.f32 %v522, %v688
        %690 = vmatmul.f32.gmra.mxu0 %v490
        %v691 = vpop.f32.mrf.mxu0
        %v692 = vadd.f32 %v522, %v691
        %693 = vmatmul.f32.gmra.mxu0 %v491
        %v694 = vpop.f32.mrf.mxu0
        %v695 = vadd.f32 %v522, %v694
        %696 = vmatmul.f32.gmra.mxu0 %v492
        %v697 = vpop.f32.mrf.mxu0
        %v698 = vadd.f32 %v522, %v697
        %699 = vmatmul.f32.gmra.mxu0 %v493
        %v700 = vpop.f32.mrf.mxu0
        %v701 = vadd.f32 %v522, %v700
        %702 = vmatmul.f32.gmra.mxu0 %v494
        %v703 = vpop.f32.mrf.mxu0
        %v704 = vadd.f32 %v522, %v703
        %705 = vmatmul.f32.gmra.mxu0 %v495
        %v706 = vpop.f32.mrf.mxu0
        %v707 = vadd.f32 %v522, %v706
        %708 = vmatmul.f32.gmra.mxu0 %v496
        %v709 = vpop.f32.mrf.mxu0
        %v710 = vadd.f32 %v522, %v709
        %711 = vmatmul.f32.gmra.mxu0 %v497
        %v712 = vpop.f32.mrf.mxu0
        %v713 = vadd.f32 %v522, %v712
        %714 = vmatmul.f32.gmra.mxu0 %v498
        %v715 = vpop.f32.mrf.mxu0
        %v716 = vadd.f32 %v522, %v715
        %717 = vmatmul.f32.gmra.mxu0 %v499
        %v718 = vpop.f32.mrf.mxu0
        %v719 = vadd.f32 %v522, %v718
        %720 = vmatmul.f32.gmra.mxu0 %v500
        %v721 = vpop.f32.mrf.mxu0
        %v722 = vadd.f32 %v522, %v721
        %723 = vmatmul.f32.gmra.mxu0 %v501
        %v724 = vpop.f32.mrf.mxu0
        %v725 = vadd.f32 %v522, %v724
        %726 = vmatmul.f32.gmra.mxu0 %v502
        %v727 = vpop.f32.mrf.mxu0
        %v728 = vadd.f32 %v522, %v727
        %729 = vmatmul.f32.gmra.mxu0 %v503
        %v730 = vpop.f32.mrf.mxu0
        %v731 = vadd.f32 %v522, %v730
        %732 = vdwg.mxu0
        %v733 = vld [vmem:[%s383] sm:$0xff]
        %v734 = vld [vmem:[#allocation9] sm:$0xff]
        %v735 = vld [vmem:[#allocation9 + $0x8] sm:$0xff]
        %v736 = vld [vmem:[#allocation9 + $0x10] sm:$0xff]
        %v737 = vld [vmem:[#allocation9 + $0x18] sm:$0xff]
        %v738 = vld [vmem:[#allocation9 + $0x20] sm:$0xff]
        %v739 = vld [vmem:[#allocation9 + $0x28] sm:$0xff]
        %v740 = vld [vmem:[#allocation9 + $0x30] sm:$0xff]
        %v741 = vld [vmem:[#allocation9 + $0x38] sm:$0xff]
        %v742 = vld [vmem:[#allocation9 + $0x40] sm:$0xff]
        %v743 = vld [vmem:[#allocation9 + $0x48] sm:$0xff]
        %v744 = vld [vmem:[#allocation9 + $0x50] sm:$0xff]
        %v745 = vld [vmem:[#allocation9 + $0x58] sm:$0xff]
        %v746 = vld [vmem:[#allocation9 + $0x60] sm:$0xff]
        %v747 = vld [vmem:[#allocation9 + $0x68] sm:$0xff]
        %v748 = vld [vmem:[#allocation9 + $0x70] sm:$0xff]
        %v749 = vld [vmem:[#allocation9 + $0x78] sm:$0xff]
        %v750 = vld [vmem:[%s5] sm:$0x1]
        %v752 = vperm.slane %v750, 0
        %754 = vmatpush.msra.mxu0 %v749
        %755 = vmatpush.msra.mxu0 %v748
        %756 = vmatpush.msra.mxu0 %v747
        %757 = vmatpush.msra.mxu0 %v746
        %758 = vmatpush.msra.mxu0 %v745
        %759 = vmatpush.msra.mxu0 %v744
        %760 = vmatpush.msra.mxu0 %v743
        %761 = vmatpush.msra.mxu0 %v742
        %762 = vmatpush.msra.mxu0 %v741
        %763 = vmatpush.msra.mxu0 %v740
        %764 = vmatpush.msra.mxu0 %v739
        %765 = vmatpush.msra.mxu0 %v738
        %766 = vmatpush.msra.mxu0 %v737
        %767 = vmatpush.msra.mxu0 %v736
        %768 = vmatpush.msra.mxu0 %v735
        %769 = vmatpush.msra.mxu0 %v734
        %770 = vmatmul.f32.gmra.mxu0 %v733
        %v771 = vpop.f32.mrf.mxu0
        %v772 = vadd.f32 %v752, %v771
        %773 = vdwg.mxu0
        %v775 = vrot.slane %v772, 1
        %v776 = vrot.slane %v772, 2
        %v777 = vrot.slane %v772, 3
        %v778 = vrot.slane %v772, 4
        %v779 = vrot.slane %v772, 5
        %v780 = vrot.slane %v772, 6
        %v781 = vrot.slane %v772, 7
        %v782 = vperm.slane %v772, 0
        %v783 = vperm.slane %v775, 0
        %v784 = vperm.slane %v776, 0
        %v785 = vperm.slane %v777, 0
        %v786 = vperm.slane %v778, 0
        %v787 = vperm.slane %v779, 0
        %v788 = vperm.slane %v780, 0
        %v789 = vperm.slane %v781, 0
        %v798 = vadd.f32 %v542, %v782
        %v799 = vadd.f32 %v545, %v782
        %v800 = vadd.f32 %v548, %v782
        %v801 = vadd.f32 %v551, %v782
        %v802 = vadd.f32 %v554, %v782
        %v803 = vadd.f32 %v557, %v782
        %v804 = vadd.f32 %v560, %v782
        %v805 = vadd.f32 %v563, %v782
        %v806 = vadd.f32 %v566, %v783
        %v807 = vadd.f32 %v569, %v783
        %v808 = vadd.f32 %v572, %v783
        %v809 = vadd.f32 %v575, %v783
        %v810 = vadd.f32 %v578, %v783
        %v811 = vadd.f32 %v581, %v783
        %v812 = vadd.f32 %v584, %v783
        %v813 = vadd.f32 %v587, %v783
        %v814 = vadd.f32 %v590, %v784
        %v815 = vadd.f32 %v593, %v784
        %v816 = vadd.f32 %v596, %v784
        %v817 = vadd.f32 %v599, %v784
        %v818 = vadd.f32 %v602, %v784
        %v819 = vadd.f32 %v605, %v784
        %v820 = vadd.f32 %v608, %v784
        %v821 = vadd.f32 %v611, %v784
        %v822 = vadd.f32 %v614, %v785
        %v823 = vadd.f32 %v617, %v785
        %v824 = vadd.f32 %v620, %v785
        %v825 = vadd.f32 %v623, %v785
        %v826 = vadd.f32 %v626, %v785
        %v827 = vadd.f32 %v629, %v785
        %v828 = vadd.f32 %v632, %v785
        %v829 = vadd.f32 %v635, %v785
        %v830 = vadd.f32 %v638, %v786
        %v831 = vadd.f32 %v641, %v786
        %v832 = vadd.f32 %v644, %v786
        %v833 = vadd.f32 %v647, %v786
        %v834 = vadd.f32 %v650, %v786
        %v835 = vadd.f32 %v653, %v786
        %v836 = vadd.f32 %v656, %v786
        %v837 = vadd.f32 %v659, %v786
        %v838 = vadd.f32 %v662, %v787
        %v839 = vadd.f32 %v665, %v787
        %v840 = vadd.f32 %v668, %v787
        %v841 = vadd.f32 %v671, %v787
        %v842 = vadd.f32 %v674, %v787
        %v843 = vadd.f32 %v677, %v787
        %v844 = vadd.f32 %v680, %v787
        %v845 = vadd.f32 %v683, %v787
        %v846 = vadd.f32 %v686, %v788
        %v847 = vadd.f32 %v689, %v788
        %v848 = vadd.f32 %v692, %v788
        %v849 = vadd.f32 %v695, %v788
        %v850 = vadd.f32 %v698, %v788
        %v851 = vadd.f32 %v701, %v788
        %v852 = vadd.f32 %v704, %v788
        %v853 = vadd.f32 %v707, %v788
        %v854 = vadd.f32 %v710, %v789
        %v855 = vadd.f32 %v713, %v789
        %v856 = vadd.f32 %v716, %v789
        %v857 = vadd.f32 %v719, %v789
        %v858 = vadd.f32 %v722, %v789
        %v859 = vadd.f32 %v725, %v789
        %v860 = vadd.f32 %v728, %v789
        %v861 = vadd.f32 %v731, %v789
        %v862 = vmax.f32 %v798, 0.0
        %v863 = vmax.f32 %v799, 0.0
        %v864 = vmax.f32 %v800, 0.0
        %v865 = vmax.f32 %v801, 0.0
        %v866 = vmax.f32 %v802, 0.0
        %v867 = vmax.f32 %v803, 0.0
        %v868 = vmax.f32 %v804, 0.0
        %v869 = vmax.f32 %v805, 0.0
        %v870 = vmax.f32 %v806, 0.0
        %v871 = vmax.f32 %v807, 0.0
        %v872 = vmax.f32 %v808, 0.0
        %v873 = vmax.f32 %v809, 0.0
        %v874 = vmax.f32 %v810, 0.0
        %v875 = vmax.f32 %v811, 0.0
        %v876 = vmax.f32 %v812, 0.0
        %v877 = vmax.f32 %v813, 0.0
        %v878 = vmax.f32 %v814, 0.0
        %v879 = vmax.f32 %v815, 0.0
        %v880 = vmax.f32 %v816, 0.0
        %v881 = vmax.f32 %v817, 0.0
        %v882 = vmax.f32 %v818, 0.0
        %v883 = vmax.f32 %v819, 0.0
        %v884 = vmax.f32 %v820, 0.0
        %v885 = vmax.f32 %v821, 0.0
        %v886 = vmax.f32 %v822, 0.0
        %v887 = vmax.f32 %v823, 0.0
        %v888 = vmax.f32 %v824, 0.0
        %v889 = vmax.f32 %v825, 0.0
        %v890 = vmax.f32 %v826, 0.0
        %v891 = vmax.f32 %v827, 0.0
        %v892 = vmax.f32 %v828, 0.0
        %v893 = vmax.f32 %v829, 0.0
        %v894 = vmax.f32 %v830, 0.0
        %v895 = vmax.f32 %v831, 0.0
        %v896 = vmax.f32 %v832, 0.0
        %v897 = vmax.f32 %v833, 0.0
        %v898 = vmax.f32 %v834, 0.0
        %v899 = vmax.f32 %v835, 0.0
        %v900 = vmax.f32 %v836, 0.0
        %v901 = vmax.f32 %v837, 0.0
        %v902 = vmax.f32 %v838, 0.0
        %v903 = vmax.f32 %v839, 0.0
        %v904 = vmax.f32 %v840, 0.0
        %v905 = vmax.f32 %v841, 0.0
        %v906 = vmax.f32 %v842, 0.0
        %v907 = vmax.f32 %v843, 0.0
        %v908 = vmax.f32 %v844, 0.0
        %v909 = vmax.f32 %v845, 0.0
        %v910 = vmax.f32 %v846, 0.0
        %v911 = vmax.f32 %v847, 0.0
        %v912 = vmax.f32 %v848, 0.0
        %v913 = vmax.f32 %v849, 0.0
        %v914 = vmax.f32 %v850, 0.0
        %v915 = vmax.f32 %v851, 0.0
        %v916 = vmax.f32 %v852, 0.0
        %v917 = vmax.f32 %v853, 0.0
        %v918 = vmax.f32 %v854, 0.0
        %v919 = vmax.f32 %v855, 0.0
        %v920 = vmax.f32 %v856, 0.0
        %v921 = vmax.f32 %v857, 0.0
        %v922 = vmax.f32 %v858, 0.0
        %v923 = vmax.f32 %v859, 0.0
        %v924 = vmax.f32 %v860, 0.0
        %v925 = vmax.f32 %v861, 0.0
        %v926 = vld [vmem:[%s6] sm:$0x1]
        %v928 = vperm.slane %v926, 0
        %v930 = vmul.f32 %v862, %v928
        %v931 = vmul.f32 %v863, %v928
        %v932 = vmul.f32 %v864, %v928
        %v933 = vmul.f32 %v865, %v928
        %v934 = vmul.f32 %v866, %v928
        %v935 = vmul.f32 %v867, %v928
        %v936 = vmul.f32 %v868, %v928
        %v937 = vmul.f32 %v869, %v928
        %v938 = vmul.f32 %v870, %v928
        %v939 = vmul.f32 %v871, %v928
        %v940 = vmul.f32 %v872, %v928
        %v941 = vmul.f32 %v873, %v928
        %v942 = vmul.f32 %v874, %v928
        %v943 = vmul.f32 %v875, %v928
        %v944 = vmul.f32 %v876, %v928
        %v945 = vmul.f32 %v877, %v928
        %v946 = vmul.f32 %v878, %v928
        %v947 = vmul.f32 %v879, %v928
        %v948 = vmul.f32 %v880, %v928
        %v949 = vmul.f32 %v881, %v928
        %v950 = vmul.f32 %v882, %v928
        %v951 = vmul.f32 %v883, %v928
        %v952 = vmul.f32 %v884, %v928
        %v953 = vmul.f32 %v885, %v928
        %v954 = vmul.f32 %v886, %v928
        %v955 = vmul.f32 %v887, %v928
        %v956 = vmul.f32 %v888, %v928
        %v957 = vmul.f32 %v889, %v928
        %v958 = vmul.f32 %v890, %v928
        %v959 = vmul.f32 %v891, %v928
        %v960 = vmul.f32 %v892, %v928
        %v961 = vmul.f32 %v893, %v928
        %v962 = vmul.f32 %v894, %v928
        %v963 = vmul.f32 %v895, %v928
        %v964 = vmul.f32 %v896, %v928
        %v965 = vmul.f32 %v897, %v928
        %v966 = vmul.f32 %v898, %v928
        %v967 = vmul.f32 %v899, %v928
        %v968 = vmul.f32 %v900, %v928
        %v969 = vmul.f32 %v901, %v928
        %v970 = vmul.f32 %v902, %v928
        %v971 = vmul.f32 %v903, %v928
        %v972 = vmul.f32 %v904, %v928
        %v973 = vmul.f32 %v905, %v928
        %v974 = vmul.f32 %v906, %v928
        %v975 = vmul.f32 %v907, %v928
        %v976 = vmul.f32 %v908, %v928
        %v977 = vmul.f32 %v909, %v928
        %v978 = vmul.f32 %v910, %v928
        %v979 = vmul.f32 %v911, %v928
        %v980 = vmul.f32 %v912, %v928
        %v981 = vmul.f32 %v913, %v928
        %v982 = vmul.f32 %v914, %v928
        %v983 = vmul.f32 %v915, %v928
        %v984 = vmul.f32 %v916, %v928
        %v985 = vmul.f32 %v917, %v928
        %v986 = vmul.f32 %v918, %v928
        %v987 = vmul.f32 %v919, %v928
        %v988 = vmul.f32 %v920, %v928
        %v989 = vmul.f32 %v921, %v928
        %v990 = vmul.f32 %v922, %v928
        %v991 = vmul.f32 %v923, %v928
        %v992 = vmul.f32 %v924, %v928
        %v993 = vmul.f32 %v925, %v928
        %994 = vadd.xlane.f32.xlu0 %v930
        %v995 = vpop.xlane.xlu0 %994
        %996 = vadd.xlane.f32.xlu0 %v931
        %v997 = vpop.xlane.xlu0 %996
        %998 = vadd.xlane.f32.xlu0 %v932
        %v999 = vpop.xlane.xlu0 %998
        %1000 = vadd.xlane.f32.xlu0 %v933
        %v1001 = vpop.xlane.xlu0 %1000
        %1002 = vadd.xlane.f32.xlu0 %v934
        %v1003 = vpop.xlane.xlu0 %1002
        %1004 = vadd.xlane.f32.xlu0 %v935
        %v1005 = vpop.xlane.xlu0 %1004
        %1006 = vadd.xlane.f32.xlu0 %v936
        %v1007 = vpop.xlane.xlu0 %1006
        %1008 = vadd.xlane.f32.xlu0 %v937
        %v1009 = vpop.xlane.xlu0 %1008
        %1010 = vadd.xlane.f32.xlu0 %v938
        %v1011 = vpop.xlane.xlu0 %1010
        %1012 = vadd.xlane.f32.xlu0 %v939
        %v1013 = vpop.xlane.xlu0 %1012
        %1014 = vadd.xlane.f32.xlu0 %v940
        %v1015 = vpop.xlane.xlu0 %1014
        %1016 = vadd.xlane.f32.xlu0 %v941
        %v1017 = vpop.xlane.xlu0 %1016
        %1018 = vadd.xlane.f32.xlu0 %v942
        %v1019 = vpop.xlane.xlu0 %1018
        %1020 = vadd.xlane.f32.xlu0 %v943
        %v1021 = vpop.xlane.xlu0 %1020
        %1022 = vadd.xlane.f32.xlu0 %v944
        %v1023 = vpop.xlane.xlu0 %1022
        %1024 = vadd.xlane.f32.xlu0 %v945
        %v1025 = vpop.xlane.xlu0 %1024
        %1026 = vadd.xlane.f32.xlu0 %v946
        %v1027 = vpop.xlane.xlu0 %1026
        %1028 = vadd.xlane.f32.xlu0 %v947
        %v1029 = vpop.xlane.xlu0 %1028
        %1030 = vadd.xlane.f32.xlu0 %v948
        %v1031 = vpop.xlane.xlu0 %1030
        %1032 = vadd.xlane.f32.xlu0 %v949
        %v1033 = vpop.xlane.xlu0 %1032
        %1034 = vadd.xlane.f32.xlu0 %v950
        %v1035 = vpop.xlane.xlu0 %1034
        %1036 = vadd.xlane.f32.xlu0 %v951
        %v1037 = vpop.xlane.xlu0 %1036
        %1038 = vadd.xlane.f32.xlu0 %v952
        %v1039 = vpop.xlane.xlu0 %1038
        %1040 = vadd.xlane.f32.xlu0 %v953
        %v1041 = vpop.xlane.xlu0 %1040
        %1042 = vadd.xlane.f32.xlu0 %v954
        %v1043 = vpop.xlane.xlu0 %1042
        %1044 = vadd.xlane.f32.xlu0 %v955
        %v1045 = vpop.xlane.xlu0 %1044
        %1046 = vadd.xlane.f32.xlu0 %v956
        %v1047 = vpop.xlane.xlu0 %1046
        %1048 = vadd.xlane.f32.xlu0 %v957
        %v1049 = vpop.xlane.xlu0 %1048
        %1050 = vadd.xlane.f32.xlu0 %v958
        %v1051 = vpop.xlane.xlu0 %1050
        %1052 = vadd.xlane.f32.xlu0 %v959
        %v1053 = vpop.xlane.xlu0 %1052
        %1054 = vadd.xlane.f32.xlu0 %v960
        %v1055 = vpop.xlane.xlu0 %1054
        %1056 = vadd.xlane.f32.xlu0 %v961
        %v1057 = vpop.xlane.xlu0 %1056
        %1058 = vadd.xlane.f32.xlu0 %v962
        %v1059 = vpop.xlane.xlu0 %1058
        %1060 = vadd.xlane.f32.xlu0 %v963
        %v1061 = vpop.xlane.xlu0 %1060
        %1062 = vadd.xlane.f32.xlu0 %v964
        %v1063 = vpop.xlane.xlu0 %1062
        %1064 = vadd.xlane.f32.xlu0 %v965
        %v1065 = vpop.xlane.xlu0 %1064
        %1066 = vadd.xlane.f32.xlu0 %v966
        %v1067 = vpop.xlane.xlu0 %1066
        %1068 = vadd.xlane.f32.xlu0 %v967
        %v1069 = vpop.xlane.xlu0 %1068
        %1070 = vadd.xlane.f32.xlu0 %v968
        %v1071 = vpop.xlane.xlu0 %1070
        %1072 = vadd.xlane.f32.xlu0 %v969
        %v1073 = vpop.xlane.xlu0 %1072
        %1074 = vadd.xlane.f32.xlu0 %v970
        %v1075 = vpop.xlane.xlu0 %1074
        %1076 = vadd.xlane.f32.xlu0 %v971
        %v1077 = vpop.xlane.xlu0 %1076
        %1078 = vadd.xlane.f32.xlu0 %v972
        %v1079 = vpop.xlane.xlu0 %1078
        %1080 = vadd.xlane.f32.xlu0 %v973
        %v1081 = vpop.xlane.xlu0 %1080
        %1082 = vadd.xlane.f32.xlu0 %v974
        %v1083 = vpop.xlane.xlu0 %1082
        %1084 = vadd.xlane.f32.xlu0 %v975
        %v1085 = vpop.xlane.xlu0 %1084
        %1086 = vadd.xlane.f32.xlu0 %v976
        %v1087 = vpop.xlane.xlu0 %1086
        %1088 = vadd.xlane.f32.xlu0 %v977
        %v1089 = vpop.xlane.xlu0 %1088
        %1090 = vadd.xlane.f32.xlu0 %v978
        %v1091 = vpop.xlane.xlu0 %1090
        %1092 = vadd.xlane.f32.xlu0 %v979
        %v1093 = vpop.xlane.xlu0 %1092
        %1094 = vadd.xlane.f32.xlu0 %v980
        %v1095 = vpop.xlane.xlu0 %1094
        %1096 = vadd.xlane.f32.xlu0 %v981
        %v1097 = vpop.xlane.xlu0 %1096
        %1098 = vadd.xlane.f32.xlu0 %v982
        %v1099 = vpop.xlane.xlu0 %1098
        %1100 = vadd.xlane.f32.xlu0 %v983
        %v1101 = vpop.xlane.xlu0 %1100
        %1102 = vadd.xlane.f32.xlu0 %v984
        %v1103 = vpop.xlane.xlu0 %1102
        %1104 = vadd.xlane.f32.xlu0 %v985
        %v1105 = vpop.xlane.xlu0 %1104
        %1106 = vadd.xlane.f32.xlu0 %v986
        %v1107 = vpop.xlane.xlu0 %1106
        %1108 = vadd.xlane.f32.xlu0 %v987
        %v1109 = vpop.xlane.xlu0 %1108
        %1110 = vadd.xlane.f32.xlu0 %v988
        %v1111 = vpop.xlane.xlu0 %1110
        %1112 = vadd.xlane.f32.xlu0 %v989
        %v1113 = vpop.xlane.xlu0 %1112
        %1114 = vadd.xlane.f32.xlu0 %v990
        %v1115 = vpop.xlane.xlu0 %1114
        %1116 = vadd.xlane.f32.xlu0 %v991
        %v1117 = vpop.xlane.xlu0 %1116
        %1118 = vadd.xlane.f32.xlu0 %v992
        %v1119 = vpop.xlane.xlu0 %1118
        %1120 = vadd.xlane.f32.xlu0 %v993
        %v1121 = vpop.xlane.xlu0 %1120
        %v1122 = vld [vmem:[#allocation2] sm:$0x1]
        %v1124 = vperm.slane %v1122, 0
        %1125 = vset.pattern.permute.xlu0 0
        %1126 = vperm.xlu0 %1125, %v1124
        %v1127 = vpop.permute.xlu0 %1126
        %v1129 = vadd.f32 %v995, %v1127
        %v1130 = vadd.f32 %v997, %v1127
        %v1131 = vadd.f32 %v999, %v1127
        %v1132 = vadd.f32 %v1001, %v1127
        %v1133 = vadd.f32 %v1003, %v1127
        %v1134 = vadd.f32 %v1005, %v1127
        %v1135 = vadd.f32 %v1007, %v1127
        %v1136 = vadd.f32 %v1009, %v1127
        %v1137 = vadd.f32 %v1011, %v1127
        %v1138 = vadd.f32 %v1013, %v1127
        %v1139 = vadd.f32 %v1015, %v1127
        %v1140 = vadd.f32 %v1017, %v1127
        %v1141 = vadd.f32 %v1019, %v1127
        %v1142 = vadd.f32 %v1021, %v1127
        %v1143 = vadd.f32 %v1023, %v1127
        %v1144 = vadd.f32 %v1025, %v1127
        %v1145 = vadd.f32 %v1027, %v1127
        %v1146 = vadd.f32 %v1029, %v1127
        %v1147 = vadd.f32 %v1031, %v1127
        %v1148 = vadd.f32 %v1033, %v1127
        %v1149 = vadd.f32 %v1035, %v1127
        %v1150 = vadd.f32 %v1037, %v1127
        %v1151 = vadd.f32 %v1039, %v1127
        %v1152 = vadd.f32 %v1041, %v1127
        %v1153 = vadd.f32 %v1043, %v1127
        %v1154 = vadd.f32 %v1045, %v1127
        %v1155 = vadd.f32 %v1047, %v1127
        %v1156 = vadd.f32 %v1049, %v1127
        %v1157 = vadd.f32 %v1051, %v1127
        %v1158 = vadd.f32 %v1053, %v1127
        %v1159 = vadd.f32 %v1055, %v1127
        %v1160 = vadd.f32 %v1057, %v1127
        %v1161 = vadd.f32 %v1059, %v1127
        %v1162 = vadd.f32 %v1061, %v1127
        %v1163 = vadd.f32 %v1063, %v1127
        %v1164 = vadd.f32 %v1065, %v1127
        %v1165 = vadd.f32 %v1067, %v1127
        %v1166 = vadd.f32 %v1069, %v1127
        %v1167 = vadd.f32 %v1071, %v1127
        %v1168 = vadd.f32 %v1073, %v1127
        %v1169 = vadd.f32 %v1075, %v1127
        %v1170 = vadd.f32 %v1077, %v1127
        %v1171 = vadd.f32 %v1079, %v1127
        %v1172 = vadd.f32 %v1081, %v1127
        %v1173 = vadd.f32 %v1083, %v1127
        %v1174 = vadd.f32 %v1085, %v1127
        %v1175 = vadd.f32 %v1087, %v1127
        %v1176 = vadd.f32 %v1089, %v1127
        %v1177 = vadd.f32 %v1091, %v1127
        %v1178 = vadd.f32 %v1093, %v1127
        %v1179 = vadd.f32 %v1095, %v1127
        %v1180 = vadd.f32 %v1097, %v1127
        %v1181 = vadd.f32 %v1099, %v1127
        %v1182 = vadd.f32 %v1101, %v1127
        %v1183 = vadd.f32 %v1103, %v1127
        %v1184 = vadd.f32 %v1105, %v1127
        %v1185 = vadd.f32 %v1107, %v1127
        %v1186 = vadd.f32 %v1109, %v1127
        %v1187 = vadd.f32 %v1111, %v1127
        %v1188 = vadd.f32 %v1113, %v1127
        %v1189 = vadd.f32 %v1115, %v1127
        %v1190 = vadd.f32 %v1117, %v1127
        %v1191 = vadd.f32 %v1119, %v1127
        %v1192 = vadd.f32 %v1121, %v1127
        %v1257 = vlaneseq
        %v1258 = vand.u32 %v1257, 127
        %v1259 = vperm.slane %v1129, %v1258
        %v1260 = vadd.s32 %v1258, 4294967288
        %v1261 = vperm.slane %v1130, %v1260
        %vm1262 = vcmask 130112
        %v1263 = vsel %vm1262, %v1261, %v1259
        %v1264 = vadd.s32 %v1258, 4294967280
        %v1265 = vperm.slane %v1131, %v1264
        %vm1266 = vcmask 195712
        %v1267 = vsel %vm1266, %v1265, %v1263
        %v1268 = vadd.s32 %v1258, 4294967272
        %v1269 = vperm.slane %v1132, %v1268
        %vm1270 = vcmask 261312
        %v1271 = vsel %vm1270, %v1269, %v1267
        %v1272 = vadd.s32 %v1258, 4294967264
        %v1273 = vperm.slane %v1133, %v1272
        %vm1274 = vcmask 326912
        %v1275 = vsel %vm1274, %v1273, %v1271
        %v1276 = vadd.s32 %v1258, 4294967256
        %v1277 = vperm.slane %v1134, %v1276
        %vm1278 = vcmask 392512
        %v1279 = vsel %vm1278, %v1277, %v1275
        %v1280 = vadd.s32 %v1258, 4294967248
        %v1281 = vperm.slane %v1135, %v1280
        %vm1282 = vcmask 458112
        %v1283 = vsel %vm1282, %v1281, %v1279
        %v1284 = vadd.s32 %v1258, 4294967240
        %v1285 = vperm.slane %v1136, %v1284
        %vm1286 = vcmask 523712
        %v1287 = vsel %vm1286, %v1285, %v1283
        %v1288 = vperm.slane %v1137, %v1258
        %v1289 = vperm.slane %v1138, %v1260
        %v1290 = vsel %vm1262, %v1289, %v1288
        %v1291 = vperm.slane %v1139, %v1264
        %v1292 = vsel %vm1266, %v1291, %v1290
        %v1293 = vperm.slane %v1140, %v1268
        %v1294 = vsel %vm1270, %v1293, %v1292
        %v1295 = vperm.slane %v1141, %v1272
        %v1296 = vsel %vm1274, %v1295, %v1294
        %v1297 = vperm.slane %v1142, %v1276
        %v1298 = vsel %vm1278, %v1297, %v1296
        %v1299 = vperm.slane %v1143, %v1280
        %v1300 = vsel %vm1282, %v1299, %v1298
        %v1301 = vperm.slane %v1144, %v1284
        %v1302 = vsel %vm1286, %v1301, %v1300
        %v1303 = vperm.slane %v1145, %v1258
        %v1304 = vperm.slane %v1146, %v1260
        %v1305 = vsel %vm1262, %v1304, %v1303
        %v1306 = vperm.slane %v1147, %v1264
        %v1307 = vsel %vm1266, %v1306, %v1305
        %v1308 = vperm.slane %v1148, %v1268
        %v1309 = vsel %vm1270, %v1308, %v1307
        %v1310 = vperm.slane %v1149, %v1272
        %v1311 = vsel %vm1274, %v1310, %v1309
        %v1312 = vperm.slane %v1150, %v1276
        %v1313 = vsel %vm1278, %v1312, %v1311
        %v1314 = vperm.slane %v1151, %v1280
        %v1315 = vsel %vm1282, %v1314, %v1313
        %v1316 = vperm.slane %v1152, %v1284
        %v1317 = vsel %vm1286, %v1316, %v1315
        %v1318 = vperm.slane %v1153, %v1258
        %v1319 = vperm.slane %v1154, %v1260
        %v1320 = vsel %vm1262, %v1319, %v1318
        %v1321 = vperm.slane %v1155, %v1264
        %v1322 = vsel %vm1266, %v1321, %v1320
        %v1323 = vperm.slane %v1156, %v1268
        %v1324 = vsel %vm1270, %v1323, %v1322
        %v1325 = vperm.slane %v1157, %v1272
        %v1326 = vsel %vm1274, %v1325, %v1324
        %v1327 = vperm.slane %v1158, %v1276
        %v1328 = vsel %vm1278, %v1327, %v1326
        %v1329 = vperm.slane %v1159, %v1280
        %v1330 = vsel %vm1282, %v1329, %v1328
        %v1331 = vperm.slane %v1160, %v1284
        %v1332 = vsel %vm1286, %v1331, %v1330
        %v1333 = vperm.slane %v1161, %v1258
        %v1334 = vperm.slane %v1162, %v1260
        %v1335 = vsel %vm1262, %v1334, %v1333
        %v1336 = vperm.slane %v1163, %v1264
        %v1337 = vsel %vm1266, %v1336, %v1335
        %v1338 = vperm.slane %v1164, %v1268
        %v1339 = vsel %vm1270, %v1338, %v1337
        %v1340 = vperm.slane %v1165, %v1272
        %v1341 = vsel %vm1274, %v1340, %v1339
        %v1342 = vperm.slane %v1166, %v1276
        %v1343 = vsel %vm1278, %v1342, %v1341
        %v1344 = vperm.slane %v1167, %v1280
        %v1345 = vsel %vm1282, %v1344, %v1343
        %v1346 = vperm.slane %v1168, %v1284
        %v1347 = vsel %vm1286, %v1346, %v1345
        %v1348 = vperm.slane %v1169, %v1258
        %v1349 = vperm.slane %v1170, %v1260
        %v1350 = vsel %vm1262, %v1349, %v1348
        %v1351 = vperm.slane %v1171, %v1264
        %v1352 = vsel %vm1266, %v1351, %v1350
        %v1353 = vperm.slane %v1172, %v1268
        %v1354 = vsel %vm1270, %v1353, %v1352
        %v1355 = vperm.slane %v1173, %v1272
        %v1356 = vsel %vm1274, %v1355, %v1354
        %v1357 = vperm.slane %v1174, %v1276
        %v1358 = vsel %vm1278, %v1357, %v1356
        %v1359 = vperm.slane %v1175, %v1280
        %v1360 = vsel %vm1282, %v1359, %v1358
        %v1361 = vperm.slane %v1176, %v1284
        %v1362 = vsel %vm1286, %v1361, %v1360
        %v1363 = vperm.slane %v1177, %v1258
        %v1364 = vperm.slane %v1178, %v1260
        %v1365 = vsel %vm1262, %v1364, %v1363
        %v1366 = vperm.slane %v1179, %v1264
        %v1367 = vsel %vm1266, %v1366, %v1365
        %v1368 = vperm.slane %v1180, %v1268
        %v1369 = vsel %vm1270, %v1368, %v1367
        %v1370 = vperm.slane %v1181, %v1272
        %v1371 = vsel %vm1274, %v1370, %v1369
        %v1372 = vperm.slane %v1182, %v1276
        %v1373 = vsel %vm1278, %v1372, %v1371
        %v1374 = vperm.slane %v1183, %v1280
        %v1375 = vsel %vm1282, %v1374, %v1373
        %v1376 = vperm.slane %v1184, %v1284
        %v1377 = vsel %vm1286, %v1376, %v1375
        %v1378 = vperm.slane %v1185, %v1258
        %v1379 = vperm.slane %v1186, %v1260
        %v1380 = vsel %vm1262, %v1379, %v1378
        %v1381 = vperm.slane %v1187, %v1264
        %v1382 = vsel %vm1266, %v1381, %v1380
        %v1383 = vperm.slane %v1188, %v1268
        %v1384 = vsel %vm1270, %v1383, %v1382
        %v1385 = vperm.slane %v1189, %v1272
        %v1386 = vsel %vm1274, %v1385, %v1384
        %v1387 = vperm.slane %v1190, %v1276
        %v1388 = vsel %vm1278, %v1387, %v1386
        %v1389 = vperm.slane %v1191, %v1280
        %v1390 = vsel %vm1282, %v1389, %v1388
        %v1391 = vperm.slane %v1192, %v1284
        %v1392 = vsel %vm1286, %v1391, %v1390
        %vm1393 = vcmask 1041409
        %v1394 = vsel %vm1393, %v1302, %v1287
        %vm1395 = vcmask 1042434
        %v1396 = vsel %vm1395, %v1317, %v1394
        %vm1397 = vcmask 1043459
        %v1398 = vsel %vm1397, %v1332, %v1396
        %vm1399 = vcmask 1044484
        %v1400 = vsel %vm1399, %v1347, %v1398
        %vm1401 = vcmask 1045509
        %v1402 = vsel %vm1401, %v1362, %v1400
        %vm1403 = vcmask 1046534
        %v1404 = vsel %vm1403, %v1377, %v1402
        %vm1405 = vcmask 1047559
        %v1406 = vsel %vm1405, %v1392, %v1404
        %vm1408 = vcmask 523264
        %v1409 = vsel %vm1408, %v1406, -inf
        %1410 = vmax.xlane.f32.xlu0 %v1409
        %v1411 = vpop.xlane.xlu0 %1410
        %v1413 = vperm.slane %v1411, 0
        %v1414 = vperm.slane %v1411, 1
        %v1415 = vperm.slane %v1411, 2
        %v1416 = vperm.slane %v1411, 3
        %v1417 = vperm.slane %v1411, 4
        %v1418 = vperm.slane %v1411, 5
        %v1419 = vperm.slane %v1411, 6
        %v1420 = vperm.slane %v1411, 7
        %v1429 = vsub.f32 %v1129, %v1413
        %v1430 = vsub.f32 %v1130, %v1413
        %v1431 = vsub.f32 %v1131, %v1413
        %v1432 = vsub.f32 %v1132, %v1413
        %v1433 = vsub.f32 %v1133, %v1413
        %v1434 = vsub.f32 %v1134, %v1413
        %v1435 = vsub.f32 %v1135, %v1413
        %v1436 = vsub.f32 %v1136, %v1413
        %v1437 = vsub.f32 %v1137, %v1414
        %v1438 = vsub.f32 %v1138, %v1414
        %v1439 = vsub.f32 %v1139, %v1414
        %v1440 = vsub.f32 %v1140, %v1414
        %v1441 = vsub.f32 %v1141, %v1414
        %v1442 = vsub.f32 %v1142, %v1414
        %v1443 = vsub.f32 %v1143, %v1414
        %v1444 = vsub.f32 %v1144, %v1414
        %v1445 = vsub.f32 %v1145, %v1415
        %v1446 = vsub.f32 %v1146, %v1415
        %v1447 = vsub.f32 %v1147, %v1415
        %v1448 = vsub.f32 %v1148, %v1415
        %v1449 = vsub.f32 %v1149, %v1415
        %v1450 = vsub.f32 %v1150, %v1415
        %v1451 = vsub.f32 %v1151, %v1415
        %v1452 = vsub.f32 %v1152, %v1415
        %v1453 = vsub.f32 %v1153, %v1416
        %v1454 = vsub.f32 %v1154, %v1416
        %v1455 = vsub.f32 %v1155, %v1416
        %v1456 = vsub.f32 %v1156, %v1416
        %v1457 = vsub.f32 %v1157, %v1416
        %v1458 = vsub.f32 %v1158, %v1416
        %v1459 = vsub.f32 %v1159, %v1416
        %v1460 = vsub.f32 %v1160, %v1416
        %v1461 = vsub.f32 %v1161, %v1417
        %v1462 = vsub.f32 %v1162, %v1417
        %v1463 = vsub.f32 %v1163, %v1417
        %v1464 = vsub.f32 %v1164, %v1417
        %v1465 = vsub.f32 %v1165, %v1417
        %v1466 = vsub.f32 %v1166, %v1417
        %v1467 = vsub.f32 %v1167, %v1417
        %v1468 = vsub.f32 %v1168, %v1417
        %v1469 = vsub.f32 %v1169, %v1418
        %v1470 = vsub.f32 %v1170, %v1418
        %v1471 = vsub.f32 %v1171, %v1418
        %v1472 = vsub.f32 %v1172, %v1418
        %v1473 = vsub.f32 %v1173, %v1418
        %v1474 = vsub.f32 %v1174, %v1418
        %v1475 = vsub.f32 %v1175, %v1418
        %v1476 = vsub.f32 %v1176, %v1418
        %v1477 = vsub.f32 %v1177, %v1419
        %v1478 = vsub.f32 %v1178, %v1419
        %v1479 = vsub.f32 %v1179, %v1419
        %v1480 = vsub.f32 %v1180, %v1419
        %v1481 = vsub.f32 %v1181, %v1419
        %v1482 = vsub.f32 %v1182, %v1419
        %v1483 = vsub.f32 %v1183, %v1419
        %v1484 = vsub.f32 %v1184, %v1419
        %v1485 = vsub.f32 %v1185, %v1420
        %v1486 = vsub.f32 %v1186, %v1420
        %v1487 = vsub.f32 %v1187, %v1420
        %v1488 = vsub.f32 %v1188, %v1420
        %v1489 = vsub.f32 %v1189, %v1420
        %v1490 = vsub.f32 %v1190, %v1420
        %v1491 = vsub.f32 %v1191, %v1420
        %v1492 = vsub.f32 %v1192, %v1420
        %v1493 = vmul.f32 %v1429, 1.442695
        %v1494 = vpow.pop %v1493
        %v1495 = vmul.f32 %v1430, 1.442695
        %v1496 = vpow.pop %v1495
        %v1497 = vmul.f32 %v1431, 1.442695
        %v1498 = vpow.pop %v1497
        %v1499 = vmul.f32 %v1432, 1.442695
        %v1500 = vpow.pop %v1499
        %v1501 = vmul.f32 %v1433, 1.442695
        %v1502 = vpow.pop %v1501
        %v1503 = vmul.f32 %v1434, 1.442695
        %v1504 = vpow.pop %v1503
        %v1505 = vmul.f32 %v1435, 1.442695
        %v1506 = vpow.pop %v1505
        %v1507 = vmul.f32 %v1436, 1.442695
        %v1508 = vpow.pop %v1507
        %v1509 = vmul.f32 %v1437, 1.442695
        %v1510 = vpow.pop %v1509
        %v1511 = vmul.f32 %v1438, 1.442695
        %v1512 = vpow.pop %v1511
        %v1513 = vmul.f32 %v1439, 1.442695
        %v1514 = vpow.pop %v1513
        %v1515 = vmul.f32 %v1440, 1.442695
        %v1516 = vpow.pop %v1515
        %v1517 = vmul.f32 %v1441, 1.442695
        %v1518 = vpow.pop %v1517
        %v1519 = vmul.f32 %v1442, 1.442695
        %v1520 = vpow.pop %v1519
        %v1521 = vmul.f32 %v1443, 1.442695
        %v1522 = vpow.pop %v1521
        %v1523 = vmul.f32 %v1444, 1.442695
        %v1524 = vpow.pop %v1523
        %v1525 = vmul.f32 %v1445, 1.442695
        %v1526 = vpow.pop %v1525
        %v1527 = vmul.f32 %v1446, 1.442695
        %v1528 = vpow.pop %v1527
        %v1529 = vmul.f32 %v1447, 1.442695
        %v1530 = vpow.pop %v1529
        %v1531 = vmul.f32 %v1448, 1.442695
        %v1532 = vpow.pop %v1531
        %v1533 = vmul.f32 %v1449, 1.442695
        %v1534 = vpow.pop %v1533
        %v1535 = vmul.f32 %v1450, 1.442695
        %v1536 = vpow.pop %v1535
        %v1537 = vmul.f32 %v1451, 1.442695
        %v1538 = vpow.pop %v1537
        %v1539 = vmul.f32 %v1452, 1.442695
        %v1540 = vpow.pop %v1539
        %v1541 = vmul.f32 %v1453, 1.442695
        %v1542 = vpow.pop %v1541
        %v1543 = vmul.f32 %v1454, 1.442695
        %v1544 = vpow.pop %v1543
        %v1545 = vmul.f32 %v1455, 1.442695
        %v1546 = vpow.pop %v1545
        %v1547 = vmul.f32 %v1456, 1.442695
        %v1548 = vpow.pop %v1547
        %v1549 = vmul.f32 %v1457, 1.442695
        %v1550 = vpow.pop %v1549
        %v1551 = vmul.f32 %v1458, 1.442695
        %v1552 = vpow.pop %v1551
        %v1553 = vmul.f32 %v1459, 1.442695
        %v1554 = vpow.pop %v1553
        %v1555 = vmul.f32 %v1460, 1.442695
        %v1556 = vpow.pop %v1555
        %v1557 = vmul.f32 %v1461, 1.442695
        %v1558 = vpow.pop %v1557
        %v1559 = vmul.f32 %v1462, 1.442695
        %v1560 = vpow.pop %v1559
        %v1561 = vmul.f32 %v1463, 1.442695
        %v1562 = vpow.pop %v1561
        %v1563 = vmul.f32 %v1464, 1.442695
        %v1564 = vpow.pop %v1563
        %v1565 = vmul.f32 %v1465, 1.442695
        %v1566 = vpow.pop %v1565
        %v1567 = vmul.f32 %v1466, 1.442695
        %v1568 = vpow.pop %v1567
        %v1569 = vmul.f32 %v1467, 1.442695
        %v1570 = vpow.pop %v1569
        %v1571 = vmul.f32 %v1468, 1.442695
        %v1572 = vpow.pop %v1571
        %v1573 = vmul.f32 %v1469, 1.442695
        %v1574 = vpow.pop %v1573
        %v1575 = vmul.f32 %v1470, 1.442695
        %v1576 = vpow.pop %v1575
        %v1577 = vmul.f32 %v1471, 1.442695
        %v1578 = vpow.pop %v1577
        %v1579 = vmul.f32 %v1472, 1.442695
        %v1580 = vpow.pop %v1579
        %v1581 = vmul.f32 %v1473, 1.442695
        %v1582 = vpow.pop %v1581
        %v1583 = vmul.f32 %v1474, 1.442695
        %v1584 = vpow.pop %v1583
        %v1585 = vmul.f32 %v1475, 1.442695
        %v1586 = vpow.pop %v1585
        %v1587 = vmul.f32 %v1476, 1.442695
        %v1588 = vpow.pop %v1587
        %v1589 = vmul.f32 %v1477, 1.442695
        %v1590 = vpow.pop %v1589
        %v1591 = vmul.f32 %v1478, 1.442695
        %v1592 = vpow.pop %v1591
        %v1593 = vmul.f32 %v1479, 1.442695
        %v1594 = vpow.pop %v1593
        %v1595 = vmul.f32 %v1480, 1.442695
        %v1596 = vpow.pop %v1595
        %v1597 = vmul.f32 %v1481, 1.442695
        %v1598 = vpow.pop %v1597
        %v1599 = vmul.f32 %v1482, 1.442695
        %v1600 = vpow.pop %v1599
        %v1601 = vmul.f32 %v1483, 1.442695
        %v1602 = vpow.pop %v1601
        %v1603 = vmul.f32 %v1484, 1.442695
        %v1604 = vpow.pop %v1603
        %v1605 = vmul.f32 %v1485, 1.442695
        %v1606 = vpow.pop %v1605
        %v1607 = vmul.f32 %v1486, 1.442695
        %v1608 = vpow.pop %v1607
        %v1609 = vmul.f32 %v1487, 1.442695
        %v1610 = vpow.pop %v1609
        %v1611 = vmul.f32 %v1488, 1.442695
        %v1612 = vpow.pop %v1611
        %v1613 = vmul.f32 %v1489, 1.442695
        %v1614 = vpow.pop %v1613
        %v1615 = vmul.f32 %v1490, 1.442695
        %v1616 = vpow.pop %v1615
        %v1617 = vmul.f32 %v1491, 1.442695
        %v1618 = vpow.pop %v1617
        %v1619 = vmul.f32 %v1492, 1.442695
        %v1620 = vpow.pop %v1619
        %1685 = vset.pattern.permute.xlu0 0
        %1686 = vperm.xlu0 %1685, %v1494
        %v1687 = vpop.permute.xlu0 %1686
        %1688 = vset.pattern.permute.xlu0 0
        %1689 = vperm.xlu0 %1688, %v1496
        %v1690 = vpop.permute.xlu0 %1689
        %1691 = vset.pattern.permute.xlu0 0
        %1692 = vperm.xlu0 %1691, %v1498
        %v1693 = vpop.permute.xlu0 %1692
        %1694 = vset.pattern.permute.xlu0 0
        %1695 = vperm.xlu0 %1694, %v1500
        %v1696 = vpop.permute.xlu0 %1695
        %1697 = vset.pattern.permute.xlu0 0
        %1698 = vperm.xlu0 %1697, %v1502
        %v1699 = vpop.permute.xlu0 %1698
        %1700 = vset.pattern.permute.xlu0 0
        %1701 = vperm.xlu0 %1700, %v1504
        %v1702 = vpop.permute.xlu0 %1701
        %1703 = vset.pattern.permute.xlu0 0
        %1704 = vperm.xlu0 %1703, %v1506
        %v1705 = vpop.permute.xlu0 %1704
        %1706 = vset.pattern.permute.xlu0 0
        %1707 = vperm.xlu0 %1706, %v1508
        %v1708 = vpop.permute.xlu0 %1707
        %1709 = vset.pattern.permute.xlu0 0
        %1710 = vperm.xlu0 %1709, %v1510
        %v1711 = vpop.permute.xlu0 %1710
        %1712 = vset.pattern.permute.xlu0 0
        %1713 = vperm.xlu0 %1712, %v1512
        %v1714 = vpop.permute.xlu0 %1713
        %1715 = vset.pattern.permute.xlu0 0
        %1716 = vperm.xlu0 %1715, %v1514
        %v1717 = vpop.permute.xlu0 %1716
        %1718 = vset.pattern.permute.xlu0 0
        %1719 = vperm.xlu0 %1718, %v1516
        %v1720 = vpop.permute.xlu0 %1719
        %1721 = vset.pattern.permute.xlu0 0
        %1722 = vperm.xlu0 %1721, %v1518
        %v1723 = vpop.permute.xlu0 %1722
        %1724 = vset.pattern.permute.xlu0 0
        %1725 = vperm.xlu0 %1724, %v1520
        %v1726 = vpop.permute.xlu0 %1725
        %1727 = vset.pattern.permute.xlu0 0
        %1728 = vperm.xlu0 %1727, %v1522
        %v1729 = vpop.permute.xlu0 %1728
        %1730 = vset.pattern.permute.xlu0 0
        %1731 = vperm.xlu0 %1730, %v1524
        %v1732 = vpop.permute.xlu0 %1731
        %1733 = vset.pattern.permute.xlu0 0
        %1734 = vperm.xlu0 %1733, %v1526
        %v1735 = vpop.permute.xlu0 %1734
        %1736 = vset.pattern.permute.xlu0 0
        %1737 = vperm.xlu0 %1736, %v1528
        %v1738 = vpop.permute.xlu0 %1737
        %1739 = vset.pattern.permute.xlu0 0
        %1740 = vperm.xlu0 %1739, %v1530
        %v1741 = vpop.permute.xlu0 %1740
        %1742 = vset.pattern.permute.xlu0 0
        %1743 = vperm.xlu0 %1742, %v1532
        %v1744 = vpop.permute.xlu0 %1743
        %1745 = vset.pattern.permute.xlu0 0
        %1746 = vperm.xlu0 %1745, %v1534
        %v1747 = vpop.permute.xlu0 %1746
        %1748 = vset.pattern.permute.xlu0 0
        %1749 = vperm.xlu0 %1748, %v1536
        %v1750 = vpop.permute.xlu0 %1749
        %1751 = vset.pattern.permute.xlu0 0
        %1752 = vperm.xlu0 %1751, %v1538
        %v1753 = vpop.permute.xlu0 %1752
        %1754 = vset.pattern.permute.xlu0 0
        %1755 = vperm.xlu0 %1754, %v1540
        %v1756 = vpop.permute.xlu0 %1755
        %1757 = vset.pattern.permute.xlu0 0
        %1758 = vperm.xlu0 %1757, %v1542
        %v1759 = vpop.permute.xlu0 %1758
        %1760 = vset.pattern.permute.xlu0 0
        %1761 = vperm.xlu0 %1760, %v1544
        %v1762 = vpop.permute.xlu0 %1761
        %1763 = vset.pattern.permute.xlu0 0
        %1764 = vperm.xlu0 %1763, %v1546
        %v1765 = vpop.permute.xlu0 %1764
        %1766 = vset.pattern.permute.xlu0 0
        %1767 = vperm.xlu0 %1766, %v1548
        %v1768 = vpop.permute.xlu0 %1767
        %1769 = vset.pattern.permute.xlu0 0
        %1770 = vperm.xlu0 %1769, %v1550
        %v1771 = vpop.permute.xlu0 %1770
        %1772 = vset.pattern.permute.xlu0 0
        %1773 = vperm.xlu0 %1772, %v1552
        %v1774 = vpop.permute.xlu0 %1773
        %1775 = vset.pattern.permute.xlu0 0
        %1776 = vperm.xlu0 %1775, %v1554
        %v1777 = vpop.permute.xlu0 %1776
        %1778 = vset.pattern.permute.xlu0 0
        %1779 = vperm.xlu0 %1778, %v1556
        %v1780 = vpop.permute.xlu0 %1779
        %1781 = vset.pattern.permute.xlu0 0
        %1782 = vperm.xlu0 %1781, %v1558
        %v1783 = vpop.permute.xlu0 %1782
        %1784 = vset.pattern.permute.xlu0 0
        %1785 = vperm.xlu0 %1784, %v1560
        %v1786 = vpop.permute.xlu0 %1785
        %1787 = vset.pattern.permute.xlu0 0
        %1788 = vperm.xlu0 %1787, %v1562
        %v1789 = vpop.permute.xlu0 %1788
        %1790 = vset.pattern.permute.xlu0 0
        %1791 = vperm.xlu0 %1790, %v1564
        %v1792 = vpop.permute.xlu0 %1791
        %1793 = vset.pattern.permute.xlu0 0
        %1794 = vperm.xlu0 %1793, %v1566
        %v1795 = vpop.permute.xlu0 %1794
        %1796 = vset.pattern.permute.xlu0 0
        %1797 = vperm.xlu0 %1796, %v1568
        %v1798 = vpop.permute.xlu0 %1797
        %1799 = vset.pattern.permute.xlu0 0
        %1800 = vperm.xlu0 %1799, %v1570
        %v1801 = vpop.permute.xlu0 %1800
        %1802 = vset.pattern.permute.xlu0 0
        %1803 = vperm.xlu0 %1802, %v1572
        %v1804 = vpop.permute.xlu0 %1803
        %1805 = vset.pattern.permute.xlu0 0
        %1806 = vperm.xlu0 %1805, %v1574
        %v1807 = vpop.permute.xlu0 %1806
        %1808 = vset.pattern.permute.xlu0 0
        %1809 = vperm.xlu0 %1808, %v1576
        %v1810 = vpop.permute.xlu0 %1809
        %1811 = vset.pattern.permute.xlu0 0
        %1812 = vperm.xlu0 %1811, %v1578
        %v1813 = vpop.permute.xlu0 %1812
        %1814 = vset.pattern.permute.xlu0 0
        %1815 = vperm.xlu0 %1814, %v1580
        %v1816 = vpop.permute.xlu0 %1815
        %1817 = vset.pattern.permute.xlu0 0
        %1818 = vperm.xlu0 %1817, %v1582
        %v1819 = vpop.permute.xlu0 %1818
        %1820 = vset.pattern.permute.xlu0 0
        %1821 = vperm.xlu0 %1820, %v1584
        %v1822 = vpop.permute.xlu0 %1821
        %1823 = vset.pattern.permute.xlu0 0
        %1824 = vperm.xlu0 %1823, %v1586
        %v1825 = vpop.permute.xlu0 %1824
        %1826 = vset.pattern.permute.xlu0 0
        %1827 = vperm.xlu0 %1826, %v1588
        %v1828 = vpop.permute.xlu0 %1827
        %1829 = vset.pattern.permute.xlu0 0
        %1830 = vperm.xlu0 %1829, %v1590
        %v1831 = vpop.permute.xlu0 %1830
        %1832 = vset.pattern.permute.xlu0 0
        %1833 = vperm.xlu0 %1832, %v1592
        %v1834 = vpop.permute.xlu0 %1833
        %1835 = vset.pattern.permute.xlu0 0
        %1836 = vperm.xlu0 %1835, %v1594
        %v1837 = vpop.permute.xlu0 %1836
        %1838 = vset.pattern.permute.xlu0 0
        %1839 = vperm.xlu0 %1838, %v1596
        %v1840 = vpop.permute.xlu0 %1839
        %1841 = vset.pattern.permute.xlu0 0
        %1842 = vperm.xlu0 %1841, %v1598
        %v1843 = vpop.permute.xlu0 %1842
        %1844 = vset.pattern.permute.xlu0 0
        %1845 = vperm.xlu0 %1844, %v1600
        %v1846 = vpop.permute.xlu0 %1845
        %1847 = vset.pattern.permute.xlu0 0
        %1848 = vperm.xlu0 %1847, %v1602
        %v1849 = vpop.permute.xlu0 %1848
        %1850 = vset.pattern.permute.xlu0 0
        %1851 = vperm.xlu0 %1850, %v1604
        %v1852 = vpop.permute.xlu0 %1851
        %1853 = vset.pattern.permute.xlu0 0
        %1854 = vperm.xlu0 %1853, %v1606
        %v1855 = vpop.permute.xlu0 %1854
        %1856 = vset.pattern.permute.xlu0 0
        %1857 = vperm.xlu0 %1856, %v1608
        %v1858 = vpop.permute.xlu0 %1857
        %1859 = vset.pattern.permute.xlu0 0
        %1860 = vperm.xlu0 %1859, %v1610
        %v1861 = vpop.permute.xlu0 %1860
        %1862 = vset.pattern.permute.xlu0 0
        %1863 = vperm.xlu0 %1862, %v1612
        %v1864 = vpop.permute.xlu0 %1863
        %1865 = vset.pattern.permute.xlu0 0
        %1866 = vperm.xlu0 %1865, %v1614
        %v1867 = vpop.permute.xlu0 %1866
        %1868 = vset.pattern.permute.xlu0 0
        %1869 = vperm.xlu0 %1868, %v1616
        %v1870 = vpop.permute.xlu0 %1869
        %1871 = vset.pattern.permute.xlu0 0
        %1872 = vperm.xlu0 %1871, %v1618
        %v1873 = vpop.permute.xlu0 %1872
        %1874 = vset.pattern.permute.xlu0 0
        %1875 = vperm.xlu0 %1874, %v1620
        %v1876 = vpop.permute.xlu0 %1875
        %v1877 = vperm.slane %v1687, %v1258
        %v1878 = vperm.slane %v1690, %v1260
        %v1879 = vsel %vm1262, %v1878, %v1877
        %v1880 = vperm.slane %v1693, %v1264
        %v1881 = vsel %vm1266, %v1880, %v1879
        %v1882 = vperm.slane %v1696, %v1268
        %v1883 = vsel %vm1270, %v1882, %v1881
        %v1884 = vperm.slane %v1699, %v1272
        %v1885 = vsel %vm1274, %v1884, %v1883
        %v1886 = vperm.slane %v1702, %v1276
        %v1887 = vsel %vm1278, %v1886, %v1885
        %v1888 = vperm.slane %v1705, %v1280
        %v1889 = vsel %vm1282, %v1888, %v1887
        %v1890 = vperm.slane %v1708, %v1284
        %v1891 = vsel %vm1286, %v1890, %v1889
        %v1892 = vperm.slane %v1711, %v1258
        %v1893 = vperm.slane %v1714, %v1260
        %v1894 = vsel %vm1262, %v1893, %v1892
        %v1895 = vperm.slane %v1717, %v1264
        %v1896 = vsel %vm1266, %v1895, %v1894
        %v1897 = vperm.slane %v1720, %v1268
        %v1898 = vsel %vm1270, %v1897, %v1896
        %v1899 = vperm.slane %v1723, %v1272
        %v1900 = vsel %vm1274, %v1899, %v1898
        %v1901 = vperm.slane %v1726, %v1276
        %v1902 = vsel %vm1278, %v1901, %v1900
        %v1903 = vperm.slane %v1729, %v1280
        %v1904 = vsel %vm1282, %v1903, %v1902
        %v1905 = vperm.slane %v1732, %v1284
        %v1906 = vsel %vm1286, %v1905, %v1904
        %v1907 = vperm.slane %v1735, %v1258
        %v1908 = vperm.slane %v1738, %v1260
        %v1909 = vsel %vm1262, %v1908, %v1907
        %v1910 = vperm.slane %v1741, %v1264
        %v1911 = vsel %vm1266, %v1910, %v1909
        %v1912 = vperm.slane %v1744, %v1268
        %v1913 = vsel %vm1270, %v1912, %v1911
        %v1914 = vperm.slane %v1747, %v1272
        %v1915 = vsel %vm1274, %v1914, %v1913
        %v1916 = vperm.slane %v1750, %v1276
        %v1917 = vsel %vm1278, %v1916, %v1915
        %v1918 = vperm.slane %v1753, %v1280
        %v1919 = vsel %vm1282, %v1918, %v1917
        %v1920 = vperm.slane %v1756, %v1284
        %v1921 = vsel %vm1286, %v1920, %v1919
        %v1922 = vperm.slane %v1759, %v1258
        %v1923 = vperm.slane %v1762, %v1260
        %v1924 = vsel %vm1262, %v1923, %v1922
        %v1925 = vperm.slane %v1765, %v1264
        %v1926 = vsel %vm1266, %v1925, %v1924
        %v1927 = vperm.slane %v1768, %v1268
        %v1928 = vsel %vm1270, %v1927, %v1926
        %v1929 = vperm.slane %v1771, %v1272
        %v1930 = vsel %vm1274, %v1929, %v1928
        %v1931 = vperm.slane %v1774, %v1276
        %v1932 = vsel %vm1278, %v1931, %v1930
        %v1933 = vperm.slane %v1777, %v1280
        %v1934 = vsel %vm1282, %v1933, %v1932
        %v1935 = vperm.slane %v1780, %v1284
        %v1936 = vsel %vm1286, %v1935, %v1934
        %v1937 = vperm.slane %v1783, %v1258
        %v1938 = vperm.slane %v1786, %v1260
        %v1939 = vsel %vm1262, %v1938, %v1937
        %v1940 = vperm.slane %v1789, %v1264
        %v1941 = vsel %vm1266, %v1940, %v1939
        %v1942 = vperm.slane %v1792, %v1268
        %v1943 = vsel %vm1270, %v1942, %v1941
        %v1944 = vperm.slane %v1795, %v1272
        %v1945 = vsel %vm1274, %v1944, %v1943
        %v1946 = vperm.slane %v1798, %v1276
        %v1947 = vsel %vm1278, %v1946, %v1945
        %v1948 = vperm.slane %v1801, %v1280
        %v1949 = vsel %vm1282, %v1948, %v1947
        %v1950 = vperm.slane %v1804, %v1284
        %v1951 = vsel %vm1286, %v1950, %v1949
        %v1952 = vperm.slane %v1807, %v1258
        %v1953 = vperm.slane %v1810, %v1260
        %v1954 = vsel %vm1262, %v1953, %v1952
        %v1955 = vperm.slane %v1813, %v1264
        %v1956 = vsel %vm1266, %v1955, %v1954
        %v1957 = vperm.slane %v1816, %v1268
        %v1958 = vsel %vm1270, %v1957, %v1956
        %v1959 = vperm.slane %v1819, %v1272
        %v1960 = vsel %vm1274, %v1959, %v1958
        %v1961 = vperm.slane %v1822, %v1276
        %v1962 = vsel %vm1278, %v1961, %v1960
        %v1963 = vperm.slane %v1825, %v1280
        %v1964 = vsel %vm1282, %v1963, %v1962
        %v1965 = vperm.slane %v1828, %v1284
        %v1966 = vsel %vm1286, %v1965, %v1964
        %v1967 = vperm.slane %v1831, %v1258
        %v1968 = vperm.slane %v1834, %v1260
        %v1969 = vsel %vm1262, %v1968, %v1967
        %v1970 = vperm.slane %v1837, %v1264
        %v1971 = vsel %vm1266, %v1970, %v1969
        %v1972 = vperm.slane %v1840, %v1268
        %v1973 = vsel %vm1270, %v1972, %v1971
        %v1974 = vperm.slane %v1843, %v1272
        %v1975 = vsel %vm1274, %v1974, %v1973
        %v1976 = vperm.slane %v1846, %v1276
        %v1977 = vsel %vm1278, %v1976, %v1975
        %v1978 = vperm.slane %v1849, %v1280
        %v1979 = vsel %vm1282, %v1978, %v1977
        %v1980 = vperm.slane %v1852, %v1284
        %v1981 = vsel %vm1286, %v1980, %v1979
        %v1982 = vperm.slane %v1855, %v1258
        %v1983 = vperm.slane %v1858, %v1260
        %v1984 = vsel %vm1262, %v1983, %v1982
        %v1985 = vperm.slane %v1861, %v1264
        %v1986 = vsel %vm1266, %v1985, %v1984
        %v1987 = vperm.slane %v1864, %v1268
        %v1988 = vsel %vm1270, %v1987, %v1986
        %v1989 = vperm.slane %v1867, %v1272
        %v1990 = vsel %vm1274, %v1989, %v1988
        %v1991 = vperm.slane %v1870, %v1276
        %v1992 = vsel %vm1278, %v1991, %v1990
        %v1993 = vperm.slane %v1873, %v1280
        %v1994 = vsel %vm1282, %v1993, %v1992
        %v1995 = vperm.slane %v1876, %v1284
        %v1996 = vsel %vm1286, %v1995, %v1994
        %v1997 = vsel %vm1393, %v1906, %v1891
        %v1998 = vsel %vm1395, %v1921, %v1997
        %v1999 = vsel %vm1397, %v1936, %v1998
        %v2000 = vsel %vm1399, %v1951, %v1999
        %v2001 = vsel %vm1401, %v1966, %v2000
        %v2002 = vsel %vm1403, %v1981, %v2001
        %v2003 = vsel %vm1405, %v1996, %v2002
        %v2005 = vsel %vm1408, %v2003, 0.0
        %2006 = vadd.xlane.f32.xlu0 %v2005
        %v2007 = vpop.xlane.xlu0 %2006
        %v2009 = vperm.slane %v2007, 0
        %v2010 = vperm.slane %v2007, 1
        %v2011 = vperm.slane %v2007, 2
        %v2012 = vperm.slane %v2007, 3
        %v2013 = vperm.slane %v2007, 4
        %v2014 = vperm.slane %v2007, 5
        %v2015 = vperm.slane %v2007, 6
        %v2016 = vperm.slane %v2007, 7
        %v2025 = vrcp.pop %v2009
        %v2026 = vmul.f32 %v2009, %v2025
        %v2027 = vsub.f32 1.0, %v2026
        %v2028 = vmul.f32 %v2025, %v2027
        %v2029 = vadd.f32 %v2025, %v2028
        %vm2030 = vweird.f32 %v2009
        %vm2031 = vweird.f32 %v2025
        %vm2032 = vmor %vm2030, %vm2031
        %v2033 = vsel %vm2032, %v2025, %v2029
        %v2034 = vand.u32 2147483647, %v2009
        %vm2035 = vcmp.eq.f32.partialorder %v2034, 8.507059e+37
        %v2036 = vand.u32 %v2009, 2147483648
        %v2037 = vor.u32 1.1754944e-38, %v2036
        %v2038 = vsel %vm2035, %v2037, %v2033
        %v2039 = vmul.f32 %v1494, %v2038
        %v2040 = vmul.f32 %v1496, %v2038
        %v2041 = vmul.f32 %v1498, %v2038
        %v2042 = vmul.f32 %v1500, %v2038
        %v2043 = vmul.f32 %v1502, %v2038
        %v2044 = vmul.f32 %v1504, %v2038
        %v2045 = vmul.f32 %v1506, %v2038
        %v2046 = vmul.f32 %v1508, %v2038
        %v2047 = vrcp.pop %v2010
        %v2048 = vmul.f32 %v2010, %v2047
        %v2049 = vsub.f32 1.0, %v2048
        %v2050 = vmul.f32 %v2047, %v2049
        %v2051 = vadd.f32 %v2047, %v2050
        %vm2052 = vweird.f32 %v2010
        %vm2053 = vweird.f32 %v2047
        %vm2054 = vmor %vm2052, %vm2053
        %v2055 = vsel %vm2054, %v2047, %v2051
        %v2056 = vand.u32 2147483647, %v2010
        %vm2057 = vcmp.eq.f32.partialorder %v2056, 8.507059e+37
        %v2058 = vand.u32 %v2010, 2147483648
        %v2059 = vor.u32 1.1754944e-38, %v2058
        %v2060 = vsel %vm2057, %v2059, %v2055
        %v2061 = vmul.f32 %v1510, %v2060
        %v2062 = vmul.f32 %v1512, %v2060
        %v2063 = vmul.f32 %v1514, %v2060
        %v2064 = vmul.f32 %v1516, %v2060
        %v2065 = vmul.f32 %v1518, %v2060
        %v2066 = vmul.f32 %v1520, %v2060
        %v2067 = vmul.f32 %v1522, %v2060
        %v2068 = vmul.f32 %v1524, %v2060
        %v2069 = vrcp.pop %v2011
        %v2070 = vmul.f32 %v2011, %v2069
        %v2071 = vsub.f32 1.0, %v2070
        %v2072 = vmul.f32 %v2069, %v2071
        %v2073 = vadd.f32 %v2069, %v2072
        %vm2074 = vweird.f32 %v2011
        %vm2075 = vweird.f32 %v2069
        %vm2076 = vmor %vm2074, %vm2075
        %v2077 = vsel %vm2076, %v2069, %v2073
        %v2078 = vand.u32 2147483647, %v2011
        %vm2079 = vcmp.eq.f32.partialorder %v2078, 8.507059e+37
        %v2080 = vand.u32 %v2011, 2147483648
        %v2081 = vor.u32 1.1754944e-38, %v2080
        %v2082 = vsel %vm2079, %v2081, %v2077
        %v2083 = vmul.f32 %v1526, %v2082
        %v2084 = vmul.f32 %v1528, %v2082
        %v2085 = vmul.f32 %v1530, %v2082
        %v2086 = vmul.f32 %v1532, %v2082
        %v2087 = vmul.f32 %v1534, %v2082
        %v2088 = vmul.f32 %v1536, %v2082
        %v2089 = vmul.f32 %v1538, %v2082
        %v2090 = vmul.f32 %v1540, %v2082
        %v2091 = vrcp.pop %v2012
        %v2092 = vmul.f32 %v2012, %v2091
        %v2093 = vsub.f32 1.0, %v2092
        %v2094 = vmul.f32 %v2091, %v2093
        %v2095 = vadd.f32 %v2091, %v2094
        %vm2096 = vweird.f32 %v2012
        %vm2097 = vweird.f32 %v2091
        %vm2098 = vmor %vm2096, %vm2097
        %v2099 = vsel %vm2098, %v2091, %v2095
        %v2100 = vand.u32 2147483647, %v2012
        %vm2101 = vcmp.eq.f32.partialorder %v2100, 8.507059e+37
        %v2102 = vand.u32 %v2012, 2147483648
        %v2103 = vor.u32 1.1754944e-38, %v2102
        %v2104 = vsel %vm2101, %v2103, %v2099
        %v2105 = vmul.f32 %v1542, %v2104
        %v2106 = vmul.f32 %v1544, %v2104
        %v2107 = vmul.f32 %v1546, %v2104
        %v2108 = vmul.f32 %v1548, %v2104
        %v2109 = vmul.f32 %v1550, %v2104
        %v2110 = vmul.f32 %v1552, %v2104
        %v2111 = vmul.f32 %v1554, %v2104
        %v2112 = vmul.f32 %v1556, %v2104
        %v2113 = vrcp.pop %v2013
        %v2114 = vmul.f32 %v2013, %v2113
        %v2115 = vsub.f32 1.0, %v2114
        %v2116 = vmul.f32 %v2113, %v2115
        %v2117 = vadd.f32 %v2113, %v2116
        %vm2118 = vweird.f32 %v2013
        %vm2119 = vweird.f32 %v2113
        %vm2120 = vmor %vm2118, %vm2119
        %v2121 = vsel %vm2120, %v2113, %v2117
        %v2122 = vand.u32 2147483647, %v2013
        %vm2123 = vcmp.eq.f32.partialorder %v2122, 8.507059e+37
        %v2124 = vand.u32 %v2013, 2147483648
        %v2125 = vor.u32 1.1754944e-38, %v2124
        %v2126 = vsel %vm2123, %v2125, %v2121
        %v2127 = vmul.f32 %v1558, %v2126
        %v2128 = vmul.f32 %v1560, %v2126
        %v2129 = vmul.f32 %v1562, %v2126
        %v2130 = vmul.f32 %v1564, %v2126
        %v2131 = vmul.f32 %v1566, %v2126
        %v2132 = vmul.f32 %v1568, %v2126
        %v2133 = vmul.f32 %v1570, %v2126
        %v2134 = vmul.f32 %v1572, %v2126
        %v2135 = vrcp.pop %v2014
        %v2136 = vmul.f32 %v2014, %v2135
        %v2137 = vsub.f32 1.0, %v2136
        %v2138 = vmul.f32 %v2135, %v2137
        %v2139 = vadd.f32 %v2135, %v2138
        %vm2140 = vweird.f32 %v2014
        %vm2141 = vweird.f32 %v2135
        %vm2142 = vmor %vm2140, %vm2141
        %v2143 = vsel %vm2142, %v2135, %v2139
        %v2144 = vand.u32 2147483647, %v2014
        %vm2145 = vcmp.eq.f32.partialorder %v2144, 8.507059e+37
        %v2146 = vand.u32 %v2014, 2147483648
        %v2147 = vor.u32 1.1754944e-38, %v2146
        %v2148 = vsel %vm2145, %v2147, %v2143
        %v2149 = vmul.f32 %v1574, %v2148
        %v2150 = vmul.f32 %v1576, %v2148
        %v2151 = vmul.f32 %v1578, %v2148
        %v2152 = vmul.f32 %v1580, %v2148
        %v2153 = vmul.f32 %v1582, %v2148
        %v2154 = vmul.f32 %v1584, %v2148
        %v2155 = vmul.f32 %v1586, %v2148
        %v2156 = vmul.f32 %v1588, %v2148
        %v2157 = vrcp.pop %v2015
        %v2158 = vmul.f32 %v2015, %v2157
        %v2159 = vsub.f32 1.0, %v2158
        %v2160 = vmul.f32 %v2157, %v2159
        %v2161 = vadd.f32 %v2157, %v2160
        %vm2162 = vweird.f32 %v2015
        %vm2163 = vweird.f32 %v2157
        %vm2164 = vmor %vm2162, %vm2163
        %v2165 = vsel %vm2164, %v2157, %v2161
        %v2166 = vand.u32 2147483647, %v2015
        %vm2167 = vcmp.eq.f32.partialorder %v2166, 8.507059e+37
        %v2168 = vand.u32 %v2015, 2147483648
        %v2169 = vor.u32 1.1754944e-38, %v2168
        %v2170 = vsel %vm2167, %v2169, %v2165
        %v2171 = vmul.f32 %v1590, %v2170
        %v2172 = vmul.f32 %v1592, %v2170
        %v2173 = vmul.f32 %v1594, %v2170
        %v2174 = vmul.f32 %v1596, %v2170
        %v2175 = vmul.f32 %v1598, %v2170
        %v2176 = vmul.f32 %v1600, %v2170
        %v2177 = vmul.f32 %v1602, %v2170
        %v2178 = vmul.f32 %v1604, %v2170
        %v2179 = vrcp.pop %v2016
        %v2180 = vmul.f32 %v2016, %v2179
        %v2181 = vsub.f32 1.0, %v2180
        %v2182 = vmul.f32 %v2179, %v2181
        %v2183 = vadd.f32 %v2179, %v2182
        %vm2184 = vweird.f32 %v2016
        %vm2185 = vweird.f32 %v2179
        %vm2186 = vmor %vm2184, %vm2185
        %v2187 = vsel %vm2186, %v2179, %v2183
        %v2188 = vand.u32 2147483647, %v2016
        %vm2189 = vcmp.eq.f32.partialorder %v2188, 8.507059e+37
        %v2190 = vand.u32 %v2016, 2147483648
        %v2191 = vor.u32 1.1754944e-38, %v2190
        %v2192 = vsel %vm2189, %v2191, %v2187
        %v2193 = vmul.f32 %v1606, %v2192
        %v2194 = vmul.f32 %v1608, %v2192
        %v2195 = vmul.f32 %v1610, %v2192
        %v2196 = vmul.f32 %v1612, %v2192
        %v2197 = vmul.f32 %v1614, %v2192
        %v2198 = vmul.f32 %v1616, %v2192
        %v2199 = vmul.f32 %v1618, %v2192
        %v2200 = vmul.f32 %v1620, %v2192
        %2265 = vset.pattern.permute.xlu0 0
        %2266 = vperm.xlu0 %2265, %v2039
        %v2267 = vpop.permute.xlu0 %2266
        %2268 = vset.pattern.permute.xlu0 0
        %2269 = vperm.xlu0 %2268, %v2040
        %v2270 = vpop.permute.xlu0 %2269
        %2271 = vset.pattern.permute.xlu0 0
        %2272 = vperm.xlu0 %2271, %v2041
        %v2273 = vpop.permute.xlu0 %2272
        %2274 = vset.pattern.permute.xlu0 0
        %2275 = vperm.xlu0 %2274, %v2042
        %v2276 = vpop.permute.xlu0 %2275
        %2277 = vset.pattern.permute.xlu0 0
        %2278 = vperm.xlu0 %2277, %v2043
        %v2279 = vpop.permute.xlu0 %2278
        %2280 = vset.pattern.permute.xlu0 0
        %2281 = vperm.xlu0 %2280, %v2044
        %v2282 = vpop.permute.xlu0 %2281
        %2283 = vset.pattern.permute.xlu0 0
        %2284 = vperm.xlu0 %2283, %v2045
        %v2285 = vpop.permute.xlu0 %2284
        %2286 = vset.pattern.permute.xlu0 0
        %2287 = vperm.xlu0 %2286, %v2046
        %v2288 = vpop.permute.xlu0 %2287
        %2289 = vset.pattern.permute.xlu0 0
        %2290 = vperm.xlu0 %2289, %v2061
        %v2291 = vpop.permute.xlu0 %2290
        %2292 = vset.pattern.permute.xlu0 0
        %2293 = vperm.xlu0 %2292, %v2062
        %v2294 = vpop.permute.xlu0 %2293
        %2295 = vset.pattern.permute.xlu0 0
        %2296 = vperm.xlu0 %2295, %v2063
        %v2297 = vpop.permute.xlu0 %2296
        %2298 = vset.pattern.permute.xlu0 0
        %2299 = vperm.xlu0 %2298, %v2064
        %v2300 = vpop.permute.xlu0 %2299
        %2301 = vset.pattern.permute.xlu0 0
        %2302 = vperm.xlu0 %2301, %v2065
        %v2303 = vpop.permute.xlu0 %2302
        %2304 = vset.pattern.permute.xlu0 0
        %2305 = vperm.xlu0 %2304, %v2066
        %v2306 = vpop.permute.xlu0 %2305
        %2307 = vset.pattern.permute.xlu0 0
        %2308 = vperm.xlu0 %2307, %v2067
        %v2309 = vpop.permute.xlu0 %2308
        %2310 = vset.pattern.permute.xlu0 0
        %2311 = vperm.xlu0 %2310, %v2068
        %v2312 = vpop.permute.xlu0 %2311
        %2313 = vset.pattern.permute.xlu0 0
        %2314 = vperm.xlu0 %2313, %v2083
        %v2315 = vpop.permute.xlu0 %2314
        %2316 = vset.pattern.permute.xlu0 0
        %2317 = vperm.xlu0 %2316, %v2084
        %v2318 = vpop.permute.xlu0 %2317
        %2319 = vset.pattern.permute.xlu0 0
        %2320 = vperm.xlu0 %2319, %v2085
        %v2321 = vpop.permute.xlu0 %2320
        %2322 = vset.pattern.permute.xlu0 0
        %2323 = vperm.xlu0 %2322, %v2086
        %v2324 = vpop.permute.xlu0 %2323
        %2325 = vset.pattern.permute.xlu0 0
        %2326 = vperm.xlu0 %2325, %v2087
        %v2327 = vpop.permute.xlu0 %2326
        %2328 = vset.pattern.permute.xlu0 0
        %2329 = vperm.xlu0 %2328, %v2088
        %v2330 = vpop.permute.xlu0 %2329
        %2331 = vset.pattern.permute.xlu0 0
        %2332 = vperm.xlu0 %2331, %v2089
        %v2333 = vpop.permute.xlu0 %2332
        %2334 = vset.pattern.permute.xlu0 0
        %2335 = vperm.xlu0 %2334, %v2090
        %v2336 = vpop.permute.xlu0 %2335
        %2337 = vset.pattern.permute.xlu0 0
        %2338 = vperm.xlu0 %2337, %v2105
        %v2339 = vpop.permute.xlu0 %2338
        %2340 = vset.pattern.permute.xlu0 0
        %2341 = vperm.xlu0 %2340, %v2106
        %v2342 = vpop.permute.xlu0 %2341
        %2343 = vset.pattern.permute.xlu0 0
        %2344 = vperm.xlu0 %2343, %v2107
        %v2345 = vpop.permute.xlu0 %2344
        %2346 = vset.pattern.permute.xlu0 0
        %2347 = vperm.xlu0 %2346, %v2108
        %v2348 = vpop.permute.xlu0 %2347
        %2349 = vset.pattern.permute.xlu0 0
        %2350 = vperm.xlu0 %2349, %v2109
        %v2351 = vpop.permute.xlu0 %2350
        %2352 = vset.pattern.permute.xlu0 0
        %2353 = vperm.xlu0 %2352, %v2110
        %v2354 = vpop.permute.xlu0 %2353
        %2355 = vset.pattern.permute.xlu0 0
        %2356 = vperm.xlu0 %2355, %v2111
        %v2357 = vpop.permute.xlu0 %2356
        %2358 = vset.pattern.permute.xlu0 0
        %2359 = vperm.xlu0 %2358, %v2112
        %v2360 = vpop.permute.xlu0 %2359
        %2361 = vset.pattern.permute.xlu0 0
        %2362 = vperm.xlu0 %2361, %v2127
        %v2363 = vpop.permute.xlu0 %2362
        %2364 = vset.pattern.permute.xlu0 0
        %2365 = vperm.xlu0 %2364, %v2128
        %v2366 = vpop.permute.xlu0 %2365
        %2367 = vset.pattern.permute.xlu0 0
        %2368 = vperm.xlu0 %2367, %v2129
        %v2369 = vpop.permute.xlu0 %2368
        %2370 = vset.pattern.permute.xlu0 0
        %2371 = vperm.xlu0 %2370, %v2130
        %v2372 = vpop.permute.xlu0 %2371
        %2373 = vset.pattern.permute.xlu0 0
        %2374 = vperm.xlu0 %2373, %v2131
        %v2375 = vpop.permute.xlu0 %2374
        %2376 = vset.pattern.permute.xlu0 0
        %2377 = vperm.xlu0 %2376, %v2132
        %v2378 = vpop.permute.xlu0 %2377
        %2379 = vset.pattern.permute.xlu0 0
        %2380 = vperm.xlu0 %2379, %v2133
        %v2381 = vpop.permute.xlu0 %2380
        %2382 = vset.pattern.permute.xlu0 0
        %2383 = vperm.xlu0 %2382, %v2134
        %v2384 = vpop.permute.xlu0 %2383
        %2385 = vset.pattern.permute.xlu0 0
        %2386 = vperm.xlu0 %2385, %v2149
        %v2387 = vpop.permute.xlu0 %2386
        %2388 = vset.pattern.permute.xlu0 0
        %2389 = vperm.xlu0 %2388, %v2150
        %v2390 = vpop.permute.xlu0 %2389
        %2391 = vset.pattern.permute.xlu0 0
        %2392 = vperm.xlu0 %2391, %v2151
        %v2393 = vpop.permute.xlu0 %2392
        %2394 = vset.pattern.permute.xlu0 0
        %2395 = vperm.xlu0 %2394, %v2152
        %v2396 = vpop.permute.xlu0 %2395
        %2397 = vset.pattern.permute.xlu0 0
        %2398 = vperm.xlu0 %2397, %v2153
        %v2399 = vpop.permute.xlu0 %2398
        %2400 = vset.pattern.permute.xlu0 0
        %2401 = vperm.xlu0 %2400, %v2154
        %v2402 = vpop.permute.xlu0 %2401
        %2403 = vset.pattern.permute.xlu0 0
        %2404 = vperm.xlu0 %2403, %v2155
        %v2405 = vpop.permute.xlu0 %2404
        %2406 = vset.pattern.permute.xlu0 0
        %2407 = vperm.xlu0 %2406, %v2156
        %v2408 = vpop.permute.xlu0 %2407
        %2409 = vset.pattern.permute.xlu0 0
        %2410 = vperm.xlu0 %2409, %v2171
        %v2411 = vpop.permute.xlu0 %2410
        %2412 = vset.pattern.permute.xlu0 0
        %2413 = vperm.xlu0 %2412, %v2172
        %v2414 = vpop.permute.xlu0 %2413
        %2415 = vset.pattern.permute.xlu0 0
        %2416 = vperm.xlu0 %2415, %v2173
        %v2417 = vpop.permute.xlu0 %2416
        %2418 = vset.pattern.permute.xlu0 0
        %2419 = vperm.xlu0 %2418, %v2174
        %v2420 = vpop.permute.xlu0 %2419
        %2421 = vset.pattern.permute.xlu0 0
        %2422 = vperm.xlu0 %2421, %v2175
        %v2423 = vpop.permute.xlu0 %2422
        %2424 = vset.pattern.permute.xlu0 0
        %2425 = vperm.xlu0 %2424, %v2176
        %v2426 = vpop.permute.xlu0 %2425
        %2427 = vset.pattern.permute.xlu0 0
        %2428 = vperm.xlu0 %2427, %v2177
        %v2429 = vpop.permute.xlu0 %2428
        %2430 = vset.pattern.permute.xlu0 0
        %2431 = vperm.xlu0 %2430, %v2178
        %v2432 = vpop.permute.xlu0 %2431
        %2433 = vset.pattern.permute.xlu0 0
        %2434 = vperm.xlu0 %2433, %v2193
        %v2435 = vpop.permute.xlu0 %2434
        %2436 = vset.pattern.permute.xlu0 0
        %2437 = vperm.xlu0 %2436, %v2194
        %v2438 = vpop.permute.xlu0 %2437
        %2439 = vset.pattern.permute.xlu0 0
        %2440 = vperm.xlu0 %2439, %v2195
        %v2441 = vpop.permute.xlu0 %2440
        %2442 = vset.pattern.permute.xlu0 0
        %2443 = vperm.xlu0 %2442, %v2196
        %v2444 = vpop.permute.xlu0 %2443
        %2445 = vset.pattern.permute.xlu0 0
        %2446 = vperm.xlu0 %2445, %v2197
        %v2447 = vpop.permute.xlu0 %2446
        %2448 = vset.pattern.permute.xlu0 0
        %2449 = vperm.xlu0 %2448, %v2198
        %v2450 = vpop.permute.xlu0 %2449
        %2451 = vset.pattern.permute.xlu0 0
        %2452 = vperm.xlu0 %2451, %v2199
        %v2453 = vpop.permute.xlu0 %2452
        %2454 = vset.pattern.permute.xlu0 0
        %2455 = vperm.xlu0 %2454, %v2200
        %v2456 = vpop.permute.xlu0 %2455
        %v2457 = vperm.slane %v2267, %v1258
        %v2458 = vperm.slane %v2270, %v1260
        %v2459 = vsel %vm1262, %v2458, %v2457
        %v2460 = vperm.slane %v2273, %v1264
        %v2461 = vsel %vm1266, %v2460, %v2459
        %v2462 = vperm.slane %v2276, %v1268
        %v2463 = vsel %vm1270, %v2462, %v2461
        %v2464 = vperm.slane %v2279, %v1272
        %v2465 = vsel %vm1274, %v2464, %v2463
        %v2466 = vperm.slane %v2282, %v1276
        %v2467 = vsel %vm1278, %v2466, %v2465
        %v2468 = vperm.slane %v2285, %v1280
        %v2469 = vsel %vm1282, %v2468, %v2467
        %v2470 = vperm.slane %v2288, %v1284
        %v2471 = vsel %vm1286, %v2470, %v2469
        %v2472 = vperm.slane %v2291, %v1258
        %v2473 = vperm.slane %v2294, %v1260
        %v2474 = vsel %vm1262, %v2473, %v2472
        %v2475 = vperm.slane %v2297, %v1264
        %v2476 = vsel %vm1266, %v2475, %v2474
        %v2477 = vperm.slane %v2300, %v1268
        %v2478 = vsel %vm1270, %v2477, %v2476
        %v2479 = vperm.slane %v2303, %v1272
        %v2480 = vsel %vm1274, %v2479, %v2478
        %v2481 = vperm.slane %v2306, %v1276
        %v2482 = vsel %vm1278, %v2481, %v2480
        %v2483 = vperm.slane %v2309, %v1280
        %v2484 = vsel %vm1282, %v2483, %v2482
        %v2485 = vperm.slane %v2312, %v1284
        %v2486 = vsel %vm1286, %v2485, %v2484
        %v2487 = vperm.slane %v2315, %v1258
        %v2488 = vperm.slane %v2318, %v1260
        %v2489 = vsel %vm1262, %v2488, %v2487
        %v2490 = vperm.slane %v2321, %v1264
        %v2491 = vsel %vm1266, %v2490, %v2489
        %v2492 = vperm.slane %v2324, %v1268
        %v2493 = vsel %vm1270, %v2492, %v2491
        %v2494 = vperm.slane %v2327, %v1272
        %v2495 = vsel %vm1274, %v2494, %v2493
        %v2496 = vperm.slane %v2330, %v1276
        %v2497 = vsel %vm1278, %v2496, %v2495
        %v2498 = vperm.slane %v2333, %v1280
        %v2499 = vsel %vm1282, %v2498, %v2497
        %v2500 = vperm.slane %v2336, %v1284
        %v2501 = vsel %vm1286, %v2500, %v2499
        %v2502 = vperm.slane %v2339, %v1258
        %v2503 = vperm.slane %v2342, %v1260
        %v2504 = vsel %vm1262, %v2503, %v2502
        %v2505 = vperm.slane %v2345, %v1264
        %v2506 = vsel %vm1266, %v2505, %v2504
        %v2507 = vperm.slane %v2348, %v1268
        %v2508 = vsel %vm1270, %v2507, %v2506
        %v2509 = vperm.slane %v2351, %v1272
        %v2510 = vsel %vm1274, %v2509, %v2508
        %v2511 = vperm.slane %v2354, %v1276
        %v2512 = vsel %vm1278, %v2511, %v2510
        %v2513 = vperm.slane %v2357, %v1280
        %v2514 = vsel %vm1282, %v2513, %v2512
        %v2515 = vperm.slane %v2360, %v1284
        %v2516 = vsel %vm1286, %v2515, %v2514
        %v2517 = vperm.slane %v2363, %v1258
        %v2518 = vperm.slane %v2366, %v1260
        %v2519 = vsel %vm1262, %v2518, %v2517
        %v2520 = vperm.slane %v2369, %v1264
        %v2521 = vsel %vm1266, %v2520, %v2519
        %v2522 = vperm.slane %v2372, %v1268
        %v2523 = vsel %vm1270, %v2522, %v2521
        %v2524 = vperm.slane %v2375, %v1272
        %v2525 = vsel %vm1274, %v2524, %v2523
        %v2526 = vperm.slane %v2378, %v1276
        %v2527 = vsel %vm1278, %v2526, %v2525
        %v2528 = vperm.slane %v2381, %v1280
        %v2529 = vsel %vm1282, %v2528, %v2527
        %v2530 = vperm.slane %v2384, %v1284
        %v2531 = vsel %vm1286, %v2530, %v2529
        %v2532 = vperm.slane %v2387, %v1258
        %v2533 = vperm.slane %v2390, %v1260
        %v2534 = vsel %vm1262, %v2533, %v2532
        %v2535 = vperm.slane %v2393, %v1264
        %v2536 = vsel %vm1266, %v2535, %v2534
        %v2537 = vperm.slane %v2396, %v1268
        %v2538 = vsel %vm1270, %v2537, %v2536
        %v2539 = vperm.slane %v2399, %v1272
        %v2540 = vsel %vm1274, %v2539, %v2538
        %v2541 = vperm.slane %v2402, %v1276
        %v2542 = vsel %vm1278, %v2541, %v2540
        %v2543 = vperm.slane %v2405, %v1280
        %v2544 = vsel %vm1282, %v2543, %v2542
        %v2545 = vperm.slane %v2408, %v1284
        %v2546 = vsel %vm1286, %v2545, %v2544
        %v2547 = vperm.slane %v2411, %v1258
        %v2548 = vperm.slane %v2414, %v1260
        %v2549 = vsel %vm1262, %v2548, %v2547
        %v2550 = vperm.slane %v2417, %v1264
        %v2551 = vsel %vm1266, %v2550, %v2549
        %v2552 = vperm.slane %v2420, %v1268
        %v2553 = vsel %vm1270, %v2552, %v2551
        %v2554 = vperm.slane %v2423, %v1272
        %v2555 = vsel %vm1274, %v2554, %v2553
        %v2556 = vperm.slane %v2426, %v1276
        %v2557 = vsel %vm1278, %v2556, %v2555
        %v2558 = vperm.slane %v2429, %v1280
        %v2559 = vsel %vm1282, %v2558, %v2557
        %v2560 = vperm.slane %v2432, %v1284
        %v2561 = vsel %vm1286, %v2560, %v2559
        %v2562 = vperm.slane %v2435, %v1258
        %v2563 = vperm.slane %v2438, %v1260
        %v2564 = vsel %vm1262, %v2563, %v2562
        %v2565 = vperm.slane %v2441, %v1264
        %v2566 = vsel %vm1266, %v2565, %v2564
        %v2567 = vperm.slane %v2444, %v1268
        %v2568 = vsel %vm1270, %v2567, %v2566
        %v2569 = vperm.slane %v2447, %v1272
        %v2570 = vsel %vm1274, %v2569, %v2568
        %v2571 = vperm.slane %v2450, %v1276
        %v2572 = vsel %vm1278, %v2571, %v2570
        %v2573 = vperm.slane %v2453, %v1280
        %v2574 = vsel %vm1282, %v2573, %v2572
        %v2575 = vperm.slane %v2456, %v1284
        %v2576 = vsel %vm1286, %v2575, %v2574
        %v2577 = vsel %vm1393, %v2486, %v2471
        %v2578 = vsel %vm1395, %v2501, %v2577
        %v2579 = vsel %vm1397, %v2516, %v2578
        %v2580 = vsel %vm1399, %v2531, %v2579
        %v2581 = vsel %vm1401, %v2546, %v2580
        %v2582 = vsel %vm1403, %v2561, %v2581
        %v2583 = vsel %vm1405, %v2576, %v2582
        %2585 = vst.msk [vmem:[%s438] sm:$0xff] %vm1408, %v2583
        %v2586 = vsel %vm1408, %v2471, 0
        %2588 = vmatpush.msra.mxu0 0.0
        %2589 = vmatpush.msra.mxu0 0.0
        %2590 = vmatpush.msra.mxu0 0.0
        %2591 = vmatpush.msra.mxu0 0.0
        %2592 = vmatpush.msra.mxu0 0.0
        %2593 = vmatpush.msra.mxu0 0.0
        %2594 = vmatpush.msra.mxu0 0.0
        %2595 = vmatpush.msra.mxu0 0.0
        %2596 = vmatpush.msra.mxu0 %v447
        %2597 = vmatpush.msra.mxu0 %v446
        %2598 = vmatpush.msra.mxu0 %v445
        %2599 = vmatpush.msra.mxu0 %v444
        %2600 = vmatpush.msra.mxu0 %v443
        %2601 = vmatpush.msra.mxu0 %v442
        %2602 = vmatpush.msra.mxu0 %v441
        %2603 = vmatpush.msra.mxu0 %v440
        %2604 = vmatmul.f32.gmra.mxu0 %v2586
        %v2605 = vpop.f32.mrf.mxu0
        %v2606 = vadd.f32 0.0, %v2605
        %2607 = vdwg.mxu0
        %v2608 = vsel %vm1408, %v2486, 0
        %2610 = vmatpush.msra.mxu0 0.0
        %2611 = vmatpush.msra.mxu0 0.0
        %2612 = vmatpush.msra.mxu0 0.0
        %2613 = vmatpush.msra.mxu0 0.0
        %2614 = vmatpush.msra.mxu0 0.0
        %2615 = vmatpush.msra.mxu0 0.0
        %2616 = vmatpush.msra.mxu0 0.0
        %2617 = vmatpush.msra.mxu0 0.0
        %2618 = vmatpush.msra.mxu0 %v455
        %2619 = vmatpush.msra.mxu0 %v454
        %2620 = vmatpush.msra.mxu0 %v453
        %2621 = vmatpush.msra.mxu0 %v452
        %2622 = vmatpush.msra.mxu0 %v451
        %2623 = vmatpush.msra.mxu0 %v450
        %2624 = vmatpush.msra.mxu0 %v449
        %2625 = vmatpush.msra.mxu0 %v448
        %2626 = vmatmul.f32.gmra.mxu0 %v2608
        %v2627 = vpop.f32.mrf.mxu0
        %v2628 = vadd.f32 0.0, %v2627
        %2629 = vdwg.mxu0
        %v2630 = vsel %vm1408, %v2501, 0
        %2632 = vmatpush.msra.mxu0 0.0
        %2633 = vmatpush.msra.mxu0 0.0
        %2634 = vmatpush.msra.mxu0 0.0
        %2635 = vmatpush.msra.mxu0 0.0
        %2636 = vmatpush.msra.mxu0 0.0
        %2637 = vmatpush.msra.mxu0 0.0
        %2638 = vmatpush.msra.mxu0 0.0
        %2639 = vmatpush.msra.mxu0 0.0
        %2640 = vmatpush.msra.mxu0 %v463
        %2641 = vmatpush.msra.mxu0 %v462
        %2642 = vmatpush.msra.mxu0 %v461
        %2643 = vmatpush.msra.mxu0 %v460
        %2644 = vmatpush.msra.mxu0 %v459
        %2645 = vmatpush.msra.mxu0 %v458
        %2646 = vmatpush.msra.mxu0 %v457
        %2647 = vmatpush.msra.mxu0 %v456
        %2648 = vmatmul.f32.gmra.mxu0 %v2630
        %v2649 = vpop.f32.mrf.mxu0
        %v2650 = vadd.f32 0.0, %v2649
        %2651 = vdwg.mxu0
        %v2652 = vsel %vm1408, %v2516, 0
        %2654 = vmatpush.msra.mxu0 0.0
        %2655 = vmatpush.msra.mxu0 0.0
        %2656 = vmatpush.msra.mxu0 0.0
        %2657 = vmatpush.msra.mxu0 0.0
        %2658 = vmatpush.msra.mxu0 0.0
        %2659 = vmatpush.msra.mxu0 0.0
        %2660 = vmatpush.msra.mxu0 0.0
        %2661 = vmatpush.msra.mxu0 0.0
        %2662 = vmatpush.msra.mxu0 %v471
        %2663 = vmatpush.msra.mxu0 %v470
        %2664 = vmatpush.msra.mxu0 %v469
        %2665 = vmatpush.msra.mxu0 %v468
        %2666 = vmatpush.msra.mxu0 %v467
        %2667 = vmatpush.msra.mxu0 %v466
        %2668 = vmatpush.msra.mxu0 %v465
        %2669 = vmatpush.msra.mxu0 %v464
        %2670 = vmatmul.f32.gmra.mxu0 %v2652
        %v2671 = vpop.f32.mrf.mxu0
        %v2672 = vadd.f32 0.0, %v2671
        %2673 = vdwg.mxu0
        %v2674 = vsel %vm1408, %v2531, 0
        %2676 = vmatpush.msra.mxu0 0.0
        %2677 = vmatpush.msra.mxu0 0.0
        %2678 = vmatpush.msra.mxu0 0.0
        %2679 = vmatpush.msra.mxu0 0.0
        %2680 = vmatpush.msra.mxu0 0.0
        %2681 = vmatpush.msra.mxu0 0.0
        %2682 = vmatpush.msra.mxu0 0.0
        %2683 = vmatpush.msra.mxu0 0.0
        %2684 = vmatpush.msra.mxu0 %v479
        %2685 = vmatpush.msra.mxu0 %v478
        %2686 = vmatpush.msra.mxu0 %v477
        %2687 = vmatpush.msra.mxu0 %v476
        %2688 = vmatpush.msra.mxu0 %v475
        %2689 = vmatpush.msra.mxu0 %v474
        %2690 = vmatpush.msra.mxu0 %v473
        %2691 = vmatpush.msra.mxu0 %v472
        %2692 = vmatmul.f32.gmra.mxu0 %v2674
        %v2693 = vpop.f32.mrf.mxu0
        %v2694 = vadd.f32 0.0, %v2693
        %2695 = vdwg.mxu0
        %v2696 = vsel %vm1408, %v2546, 0
        %2698 = vmatpush.msra.mxu0 0.0
        %2699 = vmatpush.msra.mxu0 0.0
        %2700 = vmatpush.msra.mxu0 0.0
        %2701 = vmatpush.msra.mxu0 0.0
        %2702 = vmatpush.msra.mxu0 0.0
        %2703 = vmatpush.msra.mxu0 0.0
        %2704 = vmatpush.msra.mxu0 0.0
        %2705 = vmatpush.msra.mxu0 0.0
        %2706 = vmatpush.msra.mxu0 %v487
        %2707 = vmatpush.msra.mxu0 %v486
        %2708 = vmatpush.msra.mxu0 %v485
        %2709 = vmatpush.msra.mxu0 %v484
        %2710 = vmatpush.msra.mxu0 %v483
        %2711 = vmatpush.msra.mxu0 %v482
        %2712 = vmatpush.msra.mxu0 %v481
        %2713 = vmatpush.msra.mxu0 %v480
        %2714 = vmatmul.f32.gmra.mxu0 %v2696
        %v2715 = vpop.f32.mrf.mxu0
        %v2716 = vadd.f32 0.0, %v2715
        %2717 = vdwg.mxu0
        %v2718 = vsel %vm1408, %v2561, 0
        %2720 = vmatpush.msra.mxu0 0.0
        %2721 = vmatpush.msra.mxu0 0.0
        %2722 = vmatpush.msra.mxu0 0.0
        %2723 = vmatpush.msra.mxu0 0.0
        %2724 = vmatpush.msra.mxu0 0.0
        %2725 = vmatpush.msra.mxu0 0.0
        %2726 = vmatpush.msra.mxu0 0.0
        %2727 = vmatpush.msra.mxu0 0.0
        %2728 = vmatpush.msra.mxu0 %v495
        %2729 = vmatpush.msra.mxu0 %v494
        %2730 = vmatpush.msra.mxu0 %v493
        %2731 = vmatpush.msra.mxu0 %v492
        %2732 = vmatpush.msra.mxu0 %v491
        %2733 = vmatpush.msra.mxu0 %v490
        %2734 = vmatpush.msra.mxu0 %v489
        %2735 = vmatpush.msra.mxu0 %v488
        %2736 = vmatmul.f32.gmra.mxu0 %v2718
        %v2737 = vpop.f32.mrf.mxu0
        %v2738 = vadd.f32 0.0, %v2737
        %2739 = vdwg.mxu0
        %v2740 = vsel %vm1408, %v2576, 0
        %2742 = vmatpush.msra.mxu0 0.0
        %2743 = vmatpush.msra.mxu0 0.0
        %2744 = vmatpush.msra.mxu0 0.0
        %2745 = vmatpush.msra.mxu0 0.0
        %2746 = vmatpush.msra.mxu0 0.0
        %2747 = vmatpush.msra.mxu0 0.0
        %2748 = vmatpush.msra.mxu0 0.0
        %2749 = vmatpush.msra.mxu0 0.0
        %2750 = vmatpush.msra.mxu0 %v503
        %2751 = vmatpush.msra.mxu0 %v502
        %2752 = vmatpush.msra.mxu0 %v501
        %2753 = vmatpush.msra.mxu0 %v500
        %2754 = vmatpush.msra.mxu0 %v499
        %2755 = vmatpush.msra.mxu0 %v498
        %2756 = vmatpush.msra.mxu0 %v497
        %2757 = vmatpush.msra.mxu0 %v496
        %2758 = vmatmul.f32.gmra.mxu0 %v2740
        %v2759 = vpop.f32.mrf.mxu0
        %v2760 = vadd.f32 0.0, %v2759
        %2761 = vdwg.mxu0
        %v2770 = vrot.slane %v2628, 7
        %v2771 = vsel %vm1393, %v2770, %v2606
        %v2772 = vrot.slane %v2650, 6
        %v2773 = vsel %vm1395, %v2772, %v2771
        %v2774 = vrot.slane %v2672, 5
        %v2775 = vsel %vm1397, %v2774, %v2773
        %v2776 = vrot.slane %v2694, 4
        %v2777 = vsel %vm1399, %v2776, %v2775
        %v2778 = vrot.slane %v2716, 3
        %v2779 = vsel %vm1401, %v2778, %v2777
        %v2780 = vrot.slane %v2738, 2
        %v2781 = vsel %vm1403, %v2780, %v2779
        %v2782 = vrot.slane %v2760, 1
        %v2783 = vsel %vm1405, %v2782, %v2781
        %2785 = vst [vmem:[%s431] sm:$0xff] %v2783
        %s2786 = sand.u32 %s222, 1
        %s2787 = scalar_lea.sflag [#allocation5], %s2786
        %s2788 = sand.u32 %s222, 1
        %s2789 = smul.addr %s2788, 8
        %s2790 = scalar_lea.vmem [#allocation11], %s2789
        %s2791 = sand.u32 %s248, 1
        %s2792 = scalar_lea.sflag [#allocation13], %s2791
        %s2793 = sand.u32 %s248, 1
        %s2794 = smul.addr %s2793, 8
        %s2795 = scalar_lea.vmem [#allocation12], %s2794
        // Predicated region
        $region69: #{tpu_custom_call.1} parent=51 // pred_check
          %p2796 = pneg %p232
        $region70: #{tpu_custom_call.1} parent=51 // pred_check_branch
          %2798 = sbr.rel (%p2796) target = $region72
        $region71: #{tpu_custom_call.1} parent=51 // pred_region
          %2800 = vsyncadd %s2787, 0
          %s2801 = smul.addr %s36, 8
          %s2802 = scalar_lea.hbm %s8, %s2801
          %s2804 = sshll.u32 %s2790, 4
          %s2805 = int_to_ptr.vmem [resolvable:$true] %s2804
          %s2806 = sshll.u32 %s2802, 4
          %s2807 = int_to_ptr.hbm [resolvable:$true] %s2806
          %2809 = dma.vmem_to_hbm [thread:$0]  %s2805, 128, %s2807, %s2787
        $region72: #{tpu_custom_call.1} parent=51 // pred_fallthru
          _
        // Predicated region
        $region73: #{tpu_custom_call.1} parent=51 // pred_check
          %p2810 = pneg %p258
        $region74: #{tpu_custom_call.1} parent=51 // pred_check_branch
          %2812 = sbr.rel (%p2810) target = $region76
        $region75: #{tpu_custom_call.1} parent=51 // pred_region
          %2814 = vsyncadd %s2792, 0
          %s2815 = smul.addr %s36, 8
          %s2816 = scalar_lea.hbm %s9, %s2815
          %s2818 = sshll.u32 %s2795, 4
          %s2819 = int_to_ptr.vmem [resolvable:$true] %s2818
          %s2820 = sshll.u32 %s2816, 4
          %s2821 = int_to_ptr.hbm [resolvable:$true] %s2820
          %2823 = dma.vmem_to_hbm [thread:$0]  %s2819, 128, %s2821, %s2792
        $region76: #{tpu_custom_call.1} parent=51 // pred_fallthru
          _
      $region52: #{tpu_custom_call.1} parent=5 // pred_fallthru
        _
      %p2824 = scmp.le.s32.totalorder 2, %s31
      // Predicated region
      $region77: #{tpu_custom_call.1} parent=5 // pred_check
        %p2825 = pneg %p2824
      $region78: #{tpu_custom_call.1} parent=5 // pred_check_branch
        %2827 = sbr.rel (%p2825) target = $region80
      $region79: #{tpu_custom_call.1} parent=5 // pred_region
        %s2828 = ssub.s32 %s31, 2
        // Predicated region
        $region81: #{tpu_custom_call.1} parent=79 // pred_check
          %p2829 = pneg %p238
        $region82: #{tpu_custom_call.1} parent=79 // pred_check_branch
          %2831 = sbr.rel (%p2829) target = $region84
        $region83: #{tpu_custom_call.1} parent=79 // pred_region
          %s2832 = sand.u32 %s223, 1
          %s2833 = scalar_lea.sflag [#allocation5], %s2832
          %s2834 = sand.u32 %s223, 1
          %s2835 = smul.addr %s2834, 8
          %s2836 = scalar_lea.vmem [#allocation11], %s2835
          %2838 = dma.done %s2833, 128
        $region84: #{tpu_custom_call.1} parent=79 // pred_fallthru
          _
        // Predicated region
        $region85: #{tpu_custom_call.1} parent=79 // pred_check
          %p2839 = pneg %p264
        $region86: #{tpu_custom_call.1} parent=79 // pred_check_branch
          %2841 = sbr.rel (%p2839) target = $region88
        $region87: #{tpu_custom_call.1} parent=79 // pred_region
          %s2842 = sand.u32 %s249, 1
          %s2843 = scalar_lea.sflag [#allocation13], %s2842
          %s2844 = sand.u32 %s249, 1
          %s2845 = smul.addr %s2844, 8
          %s2846 = scalar_lea.vmem [#allocation12], %s2845
          %2848 = dma.done %s2843, 128
        $region88: #{tpu_custom_call.1} parent=79 // pred_fallthru
          _
      $region80: #{tpu_custom_call.1} parent=5 // pred_fallthru
        _
    $region6: #{tpu_custom_call.1} parent=1 // loop_footer
      %s35 = sadd.s32 1, %s31
    $region7: #{tpu_custom_call.1} parent=1 // loop_footer_branch
      %30 = sbr.rel target = $region3
    $region8: #{tpu_custom_call.1} parent=1 // loop_exit
      _
    %2849 = vsyncpa [#allocation4], 1
    %s2850 = scalar_lea.sflag [#allocation4], 1
    %2851 = vsyncpa %s2850, 1
    %2852 = vsyncpa [#allocation7], 1
    %s2853 = scalar_lea.sflag [#allocation7], 1
    %2854 = vsyncpa %s2853, 1
    %2855 = vsyncpa [#allocation10], 1
    %2856 = vsyncpa [#allocation5], 1
    %s2857 = scalar_lea.sflag [#allocation5], 1
    %2858 = vsyncpa %s2857, 1
    %2859 = vsyncpa [#allocation13], 1
    %s2860 = scalar_lea.sflag [#allocation13], 1
    %2861 = vsyncpa %s2860, 1

</llo_original>
